<compile_context>
chip_gen: v7x
topology: tpu7x:2x2x1
jax: 0.10.0
libtpu: 0.0.40
codegen_flags: <defaults>
</compile_context>

<pallas_src>
import jax
import jax.numpy as jnp
from jax.experimental import pallas as pl
from jax.experimental.pallas import tpu as pltpu


def _critic_kernel(x_ref, u_ref, w14x_ref, w14u_ref, b14_ref,
                   w25_ref, b25_ref, w36_ref, b36_ref, q_ref):
    # In-kernel cast of the tiny state/action tiles (cheap VPU work).
    x = x_ref[...].astype(jnp.bfloat16)                                  # (bm, S)
    u = u_ref[...].astype(jnp.bfloat16)                                  # (bm, A)
    h = (jnp.dot(x, w14x_ref[...], preferred_element_type=jnp.float32)
         + jnp.dot(u, w14u_ref[...], preferred_element_type=jnp.float32)
         + b14_ref[...])                                                 # (bm, 896) f32
    h = jnp.maximum(h, 0.0).astype(jnp.bfloat16)
    g = jnp.dot(h, w25_ref[...], preferred_element_type=jnp.float32) + b25_ref[...]
    g = jnp.maximum(g, 0.0).astype(jnp.bfloat16)                         # (bm, 640)
    q_ref[...] = jnp.dot(g, w36_ref[...],
                         preferred_element_type=jnp.float32) + b36_ref[...]  # (bm, 2) f32


_H1_HEAD = 448   # 400 padded to lane-friendly per-head width (2*448 = 896 = 7*128)
_H2_HEAD = 320   # 300 padded                               (2*320 = 640 = 5*128)


def _pad_to(w, rows, cols):
    return jnp.pad(w, ((0, rows - w.shape[0]), (0, cols - w.shape[1])))


def pack_critic_params(params, state_dim):
    """One-time packing: fuse + lane-pad twin-head weights.

    Returns (w14x, w14u, b14, w25, b25, w36, b36) with bf16 weights, f32 biases.
    Zero padding + block-diagonal zeros keep the math exactly equal to the two
    separate heads (relu(0) = 0, zero rows contribute nothing downstream).
    """
    (w1, b1, w2, b2, w3, b3, w4, b4, w5, b5, w6, b6) = params
    f_in = w1.shape[0]

    # Layer 1/4: (F, 400) -> (F, 448), concat along columns -> (F, 896),
    # then split rows into the state part and the action part.
    w14 = jnp.concatenate([_pad_to(w1, f_in, _H1_HEAD),
                           _pad_to(w4, f_in, _H1_HEAD)], axis=1)
    w14x = w14[:state_dim].astype(jnp.bfloat16)                          # (S, 896)
    w14u = w14[state_dim:].astype(jnp.bfloat16)                          # (A, 896)
    b14 = jnp.concatenate([_pad_to(b1, 1, _H1_HEAD),
                           _pad_to(b4, 1, _H1_HEAD)], axis=1)            # (1, 896) f32

    # Layer 2/5: block-diagonal (896, 640).
    z_h = jnp.zeros((_H1_HEAD, _H2_HEAD), jnp.float32)
    w25 = jnp.concatenate(
        [jnp.concatenate([_pad_to(w2, _H1_HEAD, _H2_HEAD), z_h], axis=1),
         jnp.concatenate([z_h, _pad_to(w5, _H1_HEAD, _H2_HEAD)], axis=1)],
        axis=0).astype(jnp.bfloat16)                                     # (896, 640)
    b25 = jnp.concatenate([_pad_to(b2, 1, _H2_HEAD),
                           _pad_to(b5, 1, _H2_HEAD)], axis=1)            # (1, 640) f32

    # Layer 3/6: block-diagonal (640, 2).
    z_o = jnp.zeros((_H2_HEAD, 1), jnp.float32)
    w36 = jnp.concatenate(
        [jnp.concatenate([_pad_to(w3, _H2_HEAD, 1), z_o], axis=1),
         jnp.concatenate([z_o, _pad_to(w6, _H2_HEAD, 1)], axis=1)],
        axis=0).astype(jnp.bfloat16)                                     # (640, 2)
    b36 = jnp.concatenate([b3, b6], axis=1)                              # (1, 2)   f32

    return (w14x, w14u, b14, w25, b25, w36, b36)


def _choose_bm(B):
    """Batch block size (static, derived from shape at trace time).

    * B < 256: single full-array block (latency-bound regime, grid overhead
      dominates; a 1-long grid is fine on every generation).
    * B >= 256: largest multiple-of-8 divisor of B with bm <= min(512, B // 2),
      guaranteeing >= 2 grid blocks so dimension_semantics=("parallel",) can
      shard across v7x's two TensorCores, while the 512 cap keeps per-step
      overhead amortized on single-TC v5e/v6e.  Falls back to one full block
      if B has no multiple-of-8 divisor in range (still correct).
    """
    if B < 256:
        return B
    best = None
    cap = min(512, B // 2)
    for bm in range(8, cap + 1, 8):
        if B % bm == 0:
            best = bm
    return best if best is not None else B


@jax.jit
def critic_forward(x, u, packed):
    """Twin-critic forward pass. Returns (q1, q2), each (B, 1) float32."""
    w14x, w14u, b14, w25, b25, w36, b36 = packed
    B, S = x.shape
    A = u.shape[1]
    H1, H2 = w14x.shape[1], w25.shape[1]

    bm = _choose_bm(B)
    grid = (B // bm,)

    batch_map = lambda i: (i, 0)
    const_map = lambda i: (0, 0)

    flops = 2 * B * ((S + A) * H1 + H1 * H2 + H2 * 2)
    bytes_accessed = ((x.size + u.size) * 4
                      + (w14x.size + w14u.size + w25.size + w36.size) * 2
                      + (b14.size + b25.size + b36.size) * 4
                      + B * 2 * 4)

    q = pl.pallas_call(
        _critic_kernel,
        out_shape=jax.ShapeDtypeStruct((B, 2), jnp.float32),
        grid=grid,
        in_specs=[
            pl.BlockSpec((bm, S), batch_map),
            pl.BlockSpec((bm, A), batch_map),
            pl.BlockSpec(w14x.shape, const_map),
            pl.BlockSpec(w14u.shape, const_map),
            pl.BlockSpec(b14.shape, const_map),
            pl.BlockSpec(w25.shape, const_map),
            pl.BlockSpec(b25.shape, const_map),
            pl.BlockSpec(w36.shape, const_map),
            pl.BlockSpec(b36.shape, const_map),
        ],
        out_specs=pl.BlockSpec((bm, 2), batch_map),
        compiler_params=pltpu.CompilerParams(dimension_semantics=("parallel",)),
        cost_estimate=pl.CostEstimate(flops=flops, transcendentals=0,
                                      bytes_accessed=bytes_accessed),
    )(x, u, w14x, w14u, b14, w25, b25, w36, b36)

    return q[:, 0:1], q[:, 1:2]


def init_critic_params(key, state_dim, action_dim):
    """Deterministic synthetic init mimicking nn.Linear default (U[-1/sqrt(fan_in), +])."""
    dims = [
        (state_dim + action_dim, 400),  # layer1
        (400, 300),                     # layer2
        (300, 1),                       # layer3
        (state_dim + action_dim, 400),  # layer4
        (400, 300),                     # layer5
        (300, 1),                       # layer6
    ]
    params = []
    for (fan_in, fan_out) in dims:
        key, kw, kb = jax.random.split(key, 3)
        bound = 1.0 / jnp.sqrt(jnp.float32(fan_in))
        w = jax.random.uniform(kw, (fan_in, fan_out), jnp.float32, -bound, bound)
        b = jax.random.uniform(kb, (1, fan_out), jnp.float32, -bound, bound)
        params.extend([w, b])
    return tuple(params)


def critic_reference_packed(x, u, packed):
    """Pure-JAX model of the kernel's exact numerics (bf16 inputs/weights, f32 accum)."""
    w14x, w14u, b14, w25, b25, w36, b36 = packed
    xb = x.astype(jnp.bfloat16)
    ub = u.astype(jnp.bfloat16)
    h = (jnp.dot(xb, w14x, preferred_element_type=jnp.float32)
         + jnp.dot(ub, w14u, preferred_element_type=jnp.float32) + b14)
    h = jnp.maximum(h, 0.0).astype(jnp.bfloat16)
    g = jnp.dot(h, w25, preferred_element_type=jnp.float32) + b25
    g = jnp.maximum(g, 0.0).astype(jnp.bfloat16)
    q = jnp.dot(g, w36, preferred_element_type=jnp.float32) + b36
    return q[:, 0:1], q[:, 1:2]


def critic_reference_f32(x, u, params):
    """Original full-precision twin-MLP (PyTorch forward semantics)."""
    (w1, b1, w2, b2, w3, b3, w4, b4, w5, b5, w6, b6) = params
    xu = jnp.concatenate([x, u], axis=1)
    h1 = jnp.maximum(xu @ w1 + b1, 0.0)
    h1 = jnp.maximum(h1 @ w2 + b2, 0.0)
    q1 = h1 @ w3 + b3
    h2 = jnp.maximum(xu @ w4 + b4, 0.0)
    h2 = jnp.maximum(h2 @ w5 + b5, 0.0)
    q2 = h2 @ w6 + b6
    return q1, q2


if __name__ == "__main__":
    # HalfCheetah dims: state_dim=17, action_dim=6. Small batch.
    state_dim, action_dim, batch = 17, 6, 2

    key = jax.random.PRNGKey(0)
    key, kx, ku, kp = jax.random.split(key, 4)
    x = jax.random.normal(kx, (batch, state_dim), jnp.float32)
    u = jax.random.normal(ku, (batch, action_dim), jnp.float32)
    raw_params = init_critic_params(kp, state_dim, action_dim)
    packed = pack_critic_params(raw_params, state_dim)   # done once, outside the hot path

    q1, q2 = critic_forward(x, u, packed)
    jax.block_until_ready((q1, q2))
    assert q1.shape == (batch, 1) and q2.shape == (batch, 1)

    # Tight check against a pure-JAX model of the kernel numerics.
    q1_p, q2_p = critic_reference_packed(x, u, packed)
    assert jnp.allclose(q1, q1_p, atol=1e-3, rtol=1e-3)
    assert jnp.allclose(q2, q2_p, atol=1e-3, rtol=1e-3)

    # Loose check against the original full-f32 twin-MLP semantics
    # (difference is only the bf16 weight/activation quantization, ~<1% relative).
    q1_f, q2_f = critic_reference_f32(x, u, raw_params)
    assert jnp.allclose(q1, q1_f, atol=5e-2, rtol=5e-2)
    assert jnp.allclose(q2, q2_f, atol=5e-2, rtol=5e-2)

    # Exercise the multi-block batch grid (B=256 -> bm=128, grid=(2,): shards
    # across both v7x TensorCores; plain serial loop on v5e/v6e).
    batch2 = 256
    key, kx2, ku2 = jax.random.split(key, 3)
    x2 = jax.random.normal(kx2, (batch2, state_dim), jnp.float32)
    u2 = jax.random.normal(ku2, (batch2, action_dim), jnp.float32)
    q1b, q2b = critic_forward(x2, u2, packed)
    jax.block_until_ready((q1b, q2b))
    q1b_p, q2b_p = critic_reference_packed(x2, u2, packed)
    assert jnp.allclose(q1b, q1b_p, atol=1e-3, rtol=1e-3)
    assert jnp.allclose(q2b, q2b_p, atol=1e-3, rtol=1e-3)

    print("KERNEL_OK")
</pallas_src>

<mosaic_0001>
module attributes {stable_mosaic.version = 11 : i64} {
  func.func @_critic_kernel(%arg0: i32, %arg1: memref<2x17xf32, #tpu.memory_space<vmem>>, %arg2: memref<2x6xf32, #tpu.memory_space<vmem>>, %arg3: memref<17x896xbf16, #tpu.memory_space<vmem>>, %arg4: memref<6x896xbf16, #tpu.memory_space<vmem>>, %arg5: memref<1x896xf32, #tpu.memory_space<vmem>>, %arg6: memref<896x640xbf16, #tpu.memory_space<vmem>>, %arg7: memref<1x640xf32, #tpu.memory_space<vmem>>, %arg8: memref<640x2xbf16, #tpu.memory_space<vmem>>, %arg9: memref<1x2xf32, #tpu.memory_space<vmem>>, %arg10: memref<2x2xf32, #tpu.memory_space<vmem>>) attributes {dimension_semantics = [#tpu.dimension_semantics<parallel>], iteration_bounds = array<i64: 1>, scalar_prefetch = 0 : i64, scratch_operands = 0 : i64, tpu.core_type = #tpu.core_type<tc>, window_params = [{transform_indices = @transform_0, window_bounds = array<i64: 2, 17>}, {transform_indices = @transform_1, window_bounds = array<i64: 2, 6>}, {pipeline_mode = #tpu.pipeline_mode<synchronous>, transform_indices = @transform_2, window_bounds = array<i64: 17, 896>}, {pipeline_mode = #tpu.pipeline_mode<synchronous>, transform_indices = @transform_3, window_bounds = array<i64: 6, 896>}, {pipeline_mode = #tpu.pipeline_mode<synchronous>, transform_indices = @transform_4, window_bounds = array<i64: 1, 896>}, {pipeline_mode = #tpu.pipeline_mode<synchronous>, transform_indices = @transform_5, window_bounds = array<i64: 896, 640>}, {pipeline_mode = #tpu.pipeline_mode<synchronous>, transform_indices = @transform_6, window_bounds = array<i64: 1, 640>}, {pipeline_mode = #tpu.pipeline_mode<synchronous>, transform_indices = @transform_7, window_bounds = array<i64: 640, 2>}, {pipeline_mode = #tpu.pipeline_mode<synchronous>, transform_indices = @transform_8, window_bounds = array<i64: 1, 2>}, {transform_indices = @transform_9, window_bounds = array<i64: 2, 2>}]} {
    %c0 = arith.constant 0 : index
    %c0_0 = arith.constant 0 : index
    %0 = vector.load %arg1[%c0, %c0_0] : memref<2x17xf32, #tpu.memory_space<vmem>>, vector<2x17xf32>
    %1 = arith.truncf %0 : vector<2x17xf32> to vector<2x17xbf16>
    %c0_1 = arith.constant 0 : index
    %c0_2 = arith.constant 0 : index
    %2 = vector.load %arg2[%c0_1, %c0_2] : memref<2x6xf32, #tpu.memory_space<vmem>>, vector<2x6xf32>
    %3 = arith.truncf %2 : vector<2x6xf32> to vector<2x6xbf16>
    %c0_3 = arith.constant 0 : index
    %c0_4 = arith.constant 0 : index
    %4 = vector.load %arg3[%c0_3, %c0_4] : memref<17x896xbf16, #tpu.memory_space<vmem>>, vector<17x896xbf16>
    %cst = arith.constant dense<0.000000e+00> : vector<2x896xf32>
    %5 = tpu.matmul %1, %4, %cst {dimension_numbers = #tpu.dot_dimension_numbers<[1], [0], [0], [1], [0, 0, 1, 1], [], []>} : vector<2x17xbf16>, vector<17x896xbf16>, vector<2x896xf32> -> vector<2x896xf32>
    %c0_5 = arith.constant 0 : index
    %c0_6 = arith.constant 0 : index
    %6 = vector.load %arg4[%c0_5, %c0_6] : memref<6x896xbf16, #tpu.memory_space<vmem>>, vector<6x896xbf16>
    %cst_7 = arith.constant dense<0.000000e+00> : vector<2x896xf32>
    %7 = tpu.matmul %3, %6, %cst_7 {dimension_numbers = #tpu.dot_dimension_numbers<[1], [0], [0], [1], [0, 0, 1, 1], [], []>} : vector<2x6xbf16>, vector<6x896xbf16>, vector<2x896xf32> -> vector<2x896xf32>
    %8 = arith.addf %5, %7 : vector<2x896xf32>
    %c0_8 = arith.constant 0 : index
    %c0_9 = arith.constant 0 : index
    %9 = vector.load %arg5[%c0_8, %c0_9] : memref<1x896xf32, #tpu.memory_space<vmem>>, vector<1x896xf32>
    %10 = vector.broadcast %9 : vector<1x896xf32> to vector<2x896xf32>
    %11 = arith.addf %8, %10 : vector<2x896xf32>
    %cst_10 = arith.constant 0.000000e+00 : f32
    %12 = vector.broadcast %cst_10 : f32 to vector<2x896xf32>
    %13 = arith.maximumf %11, %12 : vector<2x896xf32>
    %14 = arith.truncf %13 : vector<2x896xf32> to vector<2x896xbf16>
    %c0_11 = arith.constant 0 : index
    %c0_12 = arith.constant 0 : index
    %15 = vector.load %arg6[%c0_11, %c0_12] : memref<896x640xbf16, #tpu.memory_space<vmem>>, vector<896x640xbf16>
    %cst_13 = arith.constant dense<0.000000e+00> : vector<2x640xf32>
    %16 = tpu.matmul %14, %15, %cst_13 {dimension_numbers = #tpu.dot_dimension_numbers<[1], [0], [0], [1], [0, 0, 1, 1], [], []>} : vector<2x896xbf16>, vector<896x640xbf16>, vector<2x640xf32> -> vector<2x640xf32>
    %c0_14 = arith.constant 0 : index
    %c0_15 = arith.constant 0 : index
    %17 = vector.load %arg7[%c0_14, %c0_15] : memref<1x640xf32, #tpu.memory_space<vmem>>, vector<1x640xf32>
    %18 = vector.broadcast %17 : vector<1x640xf32> to vector<2x640xf32>
    %19 = arith.addf %16, %18 : vector<2x640xf32>
    %cst_16 = arith.constant 0.000000e+00 : f32
    %20 = vector.broadcast %cst_16 : f32 to vector<2x640xf32>
    %21 = arith.maximumf %19, %20 : vector<2x640xf32>
    %22 = arith.truncf %21 : vector<2x640xf32> to vector<2x640xbf16>
    %c0_17 = arith.constant 0 : index
    %c0_18 = arith.constant 0 : index
    %23 = vector.load %arg8[%c0_17, %c0_18] : memref<640x2xbf16, #tpu.memory_space<vmem>>, vector<640x2xbf16>
    %cst_19 = arith.constant dense<0.000000e+00> : vector<2x2xf32>
    %24 = tpu.matmul %22, %23, %cst_19 {dimension_numbers = #tpu.dot_dimension_numbers<[1], [0], [0], [1], [0, 0, 1, 1], [], []>} : vector<2x640xbf16>, vector<640x2xbf16>, vector<2x2xf32> -> vector<2x2xf32>
    %c0_20 = arith.constant 0 : index
    %c0_21 = arith.constant 0 : index
    %25 = vector.load %arg9[%c0_20, %c0_21] : memref<1x2xf32, #tpu.memory_space<vmem>>, vector<1x2xf32>
    %26 = vector.broadcast %25 : vector<1x2xf32> to vector<2x2xf32>
    %27 = arith.addf %24, %26 : vector<2x2xf32>
    %c0_22 = arith.constant 0 : index
    %c0_23 = arith.constant 0 : index
    %28 = vector.load %arg10[%c0_22, %c0_23] : memref<2x2xf32, #tpu.memory_space<vmem>>, vector<2x2xf32>
    tpu.vector_store %arg10[%c0_22, %c0_23], %27 {strides = array<i32>} : memref<2x2xf32, #tpu.memory_space<vmem>>, vector<2x2xf32>,
    return
  }
  func.func @transform_0(%arg0: i32) -> (i32, i32) {
    %c0_i32 = arith.constant 0 : i32
    %c0_i32_0 = arith.constant 0 : i32
    return %arg0, %c0_i32 : i32, i32
  }
  func.func @transform_1(%arg0: i32) -> (i32, i32) {
    %c0_i32 = arith.constant 0 : i32
    %c0_i32_0 = arith.constant 0 : i32
    return %arg0, %c0_i32 : i32, i32
  }
  func.func @transform_2(%arg0: i32) -> (i32, i32) {
    %c0_i32 = arith.constant 0 : i32
    %c0_i32_0 = arith.constant 0 : i32
    %c0_i32_1 = arith.constant 0 : i32
    return %c0_i32, %c0_i32_0 : i32, i32
  }
  func.func @transform_3(%arg0: i32) -> (i32, i32) {
    %c0_i32 = arith.constant 0 : i32
    %c0_i32_0 = arith.constant 0 : i32
    %c0_i32_1 = arith.constant 0 : i32
    return %c0_i32, %c0_i32_0 : i32, i32
  }
  func.func @transform_4(%arg0: i32) -> (i32, i32) {
    %c0_i32 = arith.constant 0 : i32
    %c0_i32_0 = arith.constant 0 : i32
    %c0_i32_1 = arith.constant 0 : i32
    return %c0_i32, %c0_i32_0 : i32, i32
  }
  func.func @transform_5(%arg0: i32) -> (i32, i32) {
    %c0_i32 = arith.constant 0 : i32
    %c0_i32_0 = arith.constant 0 : i32
    %c0_i32_1 = arith.constant 0 : i32
    return %c0_i32, %c0_i32_0 : i32, i32
  }
  func.func @transform_6(%arg0: i32) -> (i32, i32) {
    %c0_i32 = arith.constant 0 : i32
    %c0_i32_0 = arith.constant 0 : i32
    %c0_i32_1 = arith.constant 0 : i32
    return %c0_i32, %c0_i32_0 : i32, i32
  }
  func.func @transform_7(%arg0: i32) -> (i32, i32) {
    %c0_i32 = arith.constant 0 : i32
    %c0_i32_0 = arith.constant 0 : i32
    %c0_i32_1 = arith.constant 0 : i32
    return %c0_i32, %c0_i32_0 : i32, i32
  }
  func.func @transform_8(%arg0: i32) -> (i32, i32) {
    %c0_i32 = arith.constant 0 : i32
    %c0_i32_0 = arith.constant 0 : i32
    %c0_i32_1 = arith.constant 0 : i32
    return %c0_i32, %c0_i32_0 : i32, i32
  }
  func.func @transform_9(%arg0: i32) -> (i32, i32) {
    %c0_i32 = arith.constant 0 : i32
    %c0_i32_0 = arith.constant 0 : i32
    return %arg0, %c0_i32 : i32, i32
  }
}

</mosaic_0001>

<llo_original>
// kernel: critic_forward.1
$region0: #{critic_forward.1}
  #allocation0 [shape = 'u32[]', space=smem, size = 0x4, offset = 0x4, fixed_abs, tag = 'smem constant byte address 0x4 - core index']
  #allocation1 [shape = 'u32[144,128]{1,0:T(1,128)}', space=vmem, size = 0x12000, scoped, tag = 'internal scratch']
  %s0 = inlined_call_operand.hbm [shape: f32[2,17], index: 0, kind: input, shape index: {}]
  %s1 = inlined_call_operand.hbm [shape: f32[2,6], index: 1, kind: input, shape index: {}]
  %s2 = inlined_call_operand.hbm [shape: bf16[17,896], index: 2, kind: input, shape index: {}]
  %s3 = inlined_call_operand.hbm [shape: bf16[6,896], index: 3, kind: input, shape index: {}]
  %s4 = inlined_call_operand.hbm [shape: f32[1,896], index: 4, kind: input, shape index: {}]
  %s5 = inlined_call_operand.hbm [shape: bf16[896,640], index: 5, kind: input, shape index: {}]
  %s6 = inlined_call_operand.hbm [shape: f32[1,640], index: 6, kind: input, shape index: {}]
  %s7 = inlined_call_operand.vmem [shape: bf16[640,2], index: 7, kind: input, shape index: {}]
  %s8 = inlined_call_operand.hbm [shape: f32[1,2], index: 8, kind: input, shape index: {}]
  %s9 = inlined_call_operand.vmem [shape: f32[2,2], index: 9, kind: output, shape index: {}]
  %s10 = sld [smem:[#allocation0]]
  $region78: #{critic_forward.1} parent=0
    _
  %s12 = ssub.s32 1, %s10
  %s13 = scalar_select 0, %s12, %s10
  $region1: #{critic_forward.1} parent=0
    #allocation2 [shape = 'u8[1024]{0}', space=vmem, size = 0x400, scoped, tag = 'input window, operand 0, single buffered']
    #allocation3 [shape = 's32[1]{0}', space=sflag, size = 0x4, scoped, tag = 'scoped memory for critic_forward.1']
    #allocation4 [shape = 'u8[1024]{0}', space=vmem, size = 0x400, scoped, tag = 'input window, operand 1, single buffered']
    #allocation5 [shape = 's32[1]{0}', space=sflag, size = 0x4, scoped, tag = 'scoped memory for critic_forward.1']
    #allocation6 [shape = 'u8[43008]{0}', space=vmem, size = 0xa800, scoped, tag = 'input window, operand 2, single buffered']
    #allocation7 [shape = 'u8[14336]{0}', space=vmem, size = 0x3800, scoped, tag = 'input window, operand 3, single buffered']
    #allocation8 [shape = 's32[1]{0}', space=sflag, size = 0x4, scoped, tag = 'scoped memory for critic_forward.1']
    #allocation9 [shape = 'u8[3584]{0}', space=vmem, size = 0x1000, scoped, tag = 'input window, operand 4, single buffered']
    #allocation10 [shape = 'u8[1146880]{0}', space=vmem, size = 0x118000, scoped, tag = 'input window, operand 5, single buffered']
    #allocation11 [shape = 's32[1]{0}', space=sflag, size = 0x4, scoped, tag = 'scoped memory for critic_forward.1']
    #allocation12 [shape = 'u8[2560]{0}', space=vmem, size = 0xc00, scoped, tag = 'input window, operand 6, single buffered']
    #allocation13 [shape = 'u8[512]{0}', space=vmem, size = 0x400, scoped, tag = 'input window, operand 8, single buffered']
    #allocation14 [shape = 's32[1]{0}', space=sflag, size = 0x4, scoped, tag = 'scoped memory for critic_forward.1']
    %14 = vsyncpa [#allocation3], 0
    %15 = vsyncpa [#allocation5], 0
    %16 = vsyncpa [#allocation8], 0
    %17 = vsyncpa [#allocation11], 0
    %18 = vsyncpa [#allocation14], 0
    // Predicated region
    $region2: #{critic_forward.1} parent=1 // pred_check
      _
    $region3: #{critic_forward.1} parent=1 // pred_check_branch
      %20 = sbr.rel (0) target = $region5
    $region4: #{critic_forward.1} parent=1 // pred_region
      %s22 = ssub.s32 32, 32
      %23 = vsyncadd [#allocation3], %s22
      %s25 = sshll.u32 [#allocation2], 4
      %s26 = int_to_ptr.vmem [resolvable:$true] %s25
      %28 = dma.hbm_to_vmem [thread:$0]  %s0, 32, %s26, [#allocation3]
    $region5: #{critic_forward.1} parent=1 // pred_fallthru
      _
    // Predicated region
    $region6: #{critic_forward.1} parent=1 // pred_check
      _
    $region7: #{critic_forward.1} parent=1 // pred_check_branch
      %30 = sbr.rel (0) target = $region9
    $region8: #{critic_forward.1} parent=1 // pred_region
      %s32 = ssub.s32 32, 32
      %33 = vsyncadd [#allocation5], %s32
      %s35 = sshll.u32 [#allocation4], 4
      %s36 = int_to_ptr.vmem [resolvable:$true] %s35
      %38 = dma.hbm_to_vmem [thread:$0]  %s1, 32, %s36, [#allocation5]
    $region9: #{critic_forward.1} parent=1 // pred_fallthru
      _
    // Predicated region
    $region10: #{critic_forward.1} parent=1 // pred_check
      _
    $region11: #{critic_forward.1} parent=1 // pred_check_branch
      %40 = sbr.rel (0) target = $region13
    $region12: #{critic_forward.1} parent=1 // pred_region
      %s42 = ssub.s32 1344, 1344
      %43 = vsyncadd [#allocation5], %s42
      %s44 = sshll.u32 [#allocation6], 4
      %s45 = int_to_ptr.vmem [resolvable:$true] %s44
      %50 = dma.hbm_to_vmem [thread:$0]  %s2, 1344, %s45, [#allocation5], 448, 448, 28
    $region13: #{critic_forward.1} parent=1 // pred_fallthru
      _
    // Predicated region
    $region14: #{critic_forward.1} parent=1 // pred_check
      _
    $region15: #{critic_forward.1} parent=1 // pred_check_branch
      %52 = sbr.rel (0) target = $region17
    $region16: #{critic_forward.1} parent=1 // pred_region
      %s54 = ssub.s32 448, 448
      %55 = vsyncadd [#allocation8], %s54
      %s57 = sshll.u32 [#allocation7], 4
      %s58 = int_to_ptr.vmem [resolvable:$true] %s57
      %60 = dma.hbm_to_vmem [thread:$0]  %s3, 448, %s58, [#allocation8]
    $region17: #{critic_forward.1} parent=1 // pred_fallthru
      _
    // Predicated region
    $region18: #{critic_forward.1} parent=1 // pred_check
      _
    $region19: #{critic_forward.1} parent=1 // pred_check_branch
      %62 = sbr.rel (0) target = $region21
    $region20: #{critic_forward.1} parent=1 // pred_region
      %s64 = ssub.s32 112, 112
      %65 = vsyncadd [#allocation8], %s64
      %s67 = sshll.u32 [#allocation9], 4
      %s68 = int_to_ptr.vmem [resolvable:$true] %s67
      %70 = dma.hbm_to_vmem [thread:$0]  %s4, 112, %s68, [#allocation8]
    $region21: #{critic_forward.1} parent=1 // pred_fallthru
      _
    // Predicated region
    $region22: #{critic_forward.1} parent=1 // pred_check
      _
    $region23: #{critic_forward.1} parent=1 // pred_check_branch
      %72 = sbr.rel (0) target = $region25
    $region24: #{critic_forward.1} parent=1 // pred_region
      %s74 = ssub.s32 35840, 35840
      %75 = vsyncadd [#allocation11], %s74
      %s76 = sshll.u32 [#allocation10], 4
      %s77 = int_to_ptr.vmem [resolvable:$true] %s76
      %82 = dma.hbm_to_vmem [thread:$0]  %s5, 35840, %s77, [#allocation11], 320, 320, 20
    $region25: #{critic_forward.1} parent=1 // pred_fallthru
      _
    // Predicated region
    $region26: #{critic_forward.1} parent=1 // pred_check
      _
    $region27: #{critic_forward.1} parent=1 // pred_check_branch
      %84 = sbr.rel (0) target = $region29
    $region28: #{critic_forward.1} parent=1 // pred_region
      %s86 = ssub.s32 80, 80
      %87 = vsyncadd [#allocation11], %s86
      %s89 = sshll.u32 [#allocation12], 4
      %s90 = int_to_ptr.vmem [resolvable:$true] %s89
      %92 = dma.hbm_to_vmem [thread:$0]  %s6, 80, %s90, [#allocation11]
    $region29: #{critic_forward.1} parent=1 // pred_fallthru
      _
    // Predicated region
    $region30: #{critic_forward.1} parent=1 // pred_check
      _
    $region31: #{critic_forward.1} parent=1 // pred_check_branch
      %94 = sbr.rel (0) target = $region33
    $region32: #{critic_forward.1} parent=1 // pred_region
      _
    $region33: #{critic_forward.1} parent=1 // pred_fallthru
      _
    // Predicated region
    $region34: #{critic_forward.1} parent=1 // pred_check
      _
    $region35: #{critic_forward.1} parent=1 // pred_check_branch
      %96 = sbr.rel (0) target = $region37
    $region36: #{critic_forward.1} parent=1 // pred_region
      %s98 = ssub.s32 16, 16
      %99 = vsyncadd [#allocation14], %s98
      %s101 = sshll.u32 [#allocation13], 4
      %s102 = int_to_ptr.vmem [resolvable:$true] %s101
      %104 = dma.hbm_to_vmem [thread:$0]  %s8, 16, %s102, [#allocation14]
    $region37: #{critic_forward.1} parent=1 // pred_fallthru
      _
    // Predicated region
    $region38: #{critic_forward.1} parent=1 // pred_check
      _
    $region39: #{critic_forward.1} parent=1 // pred_check_branch
      %106 = sbr.rel (0) target = $region41
    $region40: #{critic_forward.1} parent=1 // pred_region
      %107 = dma.done [#allocation3], 32
    $region41: #{critic_forward.1} parent=1 // pred_fallthru
      _
    // Predicated region
    $region42: #{critic_forward.1} parent=1 // pred_check
      _
    $region43: #{critic_forward.1} parent=1 // pred_check_branch
      %109 = sbr.rel (0) target = $region45
    $region44: #{critic_forward.1} parent=1 // pred_region
      %110 = dma.done [#allocation5], 32
    $region45: #{critic_forward.1} parent=1 // pred_fallthru
      _
    // Predicated region
    $region46: #{critic_forward.1} parent=1 // pred_check
      _
    $region47: #{critic_forward.1} parent=1 // pred_check_branch
      %112 = sbr.rel (0) target = $region49
    $region48: #{critic_forward.1} parent=1 // pred_region
      %113 = dma.done [#allocation5], 1344
    $region49: #{critic_forward.1} parent=1 // pred_fallthru
      _
    // Predicated region
    $region50: #{critic_forward.1} parent=1 // pred_check
      _
    $region51: #{critic_forward.1} parent=1 // pred_check_branch
      %115 = sbr.rel (0) target = $region53
    $region52: #{critic_forward.1} parent=1 // pred_region
      %116 = dma.done [#allocation8], 448
    $region53: #{critic_forward.1} parent=1 // pred_fallthru
      _
    // Predicated region
    $region54: #{critic_forward.1} parent=1 // pred_check
      _
    $region55: #{critic_forward.1} parent=1 // pred_check_branch
      %118 = sbr.rel (0) target = $region57
    $region56: #{critic_forward.1} parent=1 // pred_region
      %119 = dma.done [#allocation8], 112
    $region57: #{critic_forward.1} parent=1 // pred_fallthru
      _
    // Predicated region
    $region58: #{critic_forward.1} parent=1 // pred_check
      _
    $region59: #{critic_forward.1} parent=1 // pred_check_branch
      %121 = sbr.rel (0) target = $region61
    $region60: #{critic_forward.1} parent=1 // pred_region
      %122 = dma.done [#allocation11], 35840
    $region61: #{critic_forward.1} parent=1 // pred_fallthru
      _
    // Predicated region
    $region62: #{critic_forward.1} parent=1 // pred_check
      _
    $region63: #{critic_forward.1} parent=1 // pred_check_branch
      %124 = sbr.rel (0) target = $region65
    $region64: #{critic_forward.1} parent=1 // pred_region
      %125 = dma.done [#allocation11], 80
    $region65: #{critic_forward.1} parent=1 // pred_fallthru
      _
    // Predicated region
    $region66: #{critic_forward.1} parent=1 // pred_check
      _
    $region67: #{critic_forward.1} parent=1 // pred_check_branch
      %127 = sbr.rel (0) target = $region69
    $region68: #{critic_forward.1} parent=1 // pred_region
      %128 = dma.done [#allocation14], 16
    $region69: #{critic_forward.1} parent=1 // pred_fallthru
      _
    %v130 = vld [vmem:[#allocation2] sm:$0x3]
    %v131 = vpack.c.bf16 %v130, %v130
    %v132 = vld [vmem:[#allocation4] sm:$0x3]
    %v133 = vpack.c.bf16 %v132, %v132
    %v134 = vld [vmem:[#allocation6] sm:$0xff]
    %v135 = vld [vmem:[#allocation6 + $0x8] sm:$0xff]
    %v136 = vld [vmem:[#allocation6 + $0x10] sm:$0xff]
    %v137 = vld [vmem:[#allocation6 + $0x18] sm:$0xf]
    %v138 = vld [vmem:[#allocation6 + $0x1c] sm:$0xff]
    %v139 = vld [vmem:[#allocation6 + $0x24] sm:$0xff]
    %v140 = vld [vmem:[#allocation6 + $0x2c] sm:$0xff]
    %v141 = vld [vmem:[#allocation6 + $0x34] sm:$0xf]
    %v142 = vld [vmem:[#allocation6 + $0x38] sm:$0x11]
    %v143 = vld [vmem:[#allocation6 + $0x40] sm:$0x11]
    %v144 = vld [vmem:[#allocation6 + $0x48] sm:$0x11]
    %v145 = vld [vmem:[#allocation6 + $0x50] sm:$0x1]
    %v146 = vld [vmem:[#allocation7] sm:$0x77]
    %v147 = vld [vmem:[#allocation7 + $0x8] sm:$0x77]
    %v148 = vld [vmem:[#allocation7 + $0x10] sm:$0x77]
    %v149 = vld [vmem:[#allocation7 + $0x18] sm:$0x7]
    %v154 = vunpack.c.l.b16 %v146
    %v155 = vunpack.c.h.b16 %v146
    %v156 = vunpack.c.l.b16 %v147
    %v157 = vunpack.c.h.b16 %v147
    %v158 = vunpack.c.l.b16 %v148
    %v159 = vunpack.c.h.b16 %v148
    %v160 = vunpack.c.l.b16 %v149
    %v161 = vpack.c.b16 %v154, %v154
    %v162 = vpack.c.b16 %v155, %v155
    %v163 = vpack.c.b16 %v156, %v156
    %v164 = vpack.c.b16 %v157, %v157
    %v165 = vpack.c.b16 %v158, %v158
    %v166 = vpack.c.b16 %v159, %v159
    %v167 = vpack.c.b16 %v160, %v160
    %vm168 = vcmask 48128
    %v170 = vsel %vm168, %v133, 0
    %vm172 = vcmask 1042432
    %v174 = vsel %vm172, %v161, 0
    %v177 = vsel %vm172, %v162, 0
    %v180 = vsel %vm172, %v163, 0
    %v183 = vsel %vm172, %v164, 0
    %v186 = vsel %vm172, %v165, 0
    %v189 = vsel %vm172, %v166, 0
    %v192 = vsel %vm172, %v167, 0
    %194 = vmatprep.subr.bf16.mxu0 %v177
    %195 = vmatpush1.bf16.msra.mxu0 %v174
    %196 = vmatprep.subr.bf16.mxu0 0
    %197 = vmatpush1.bf16.msra.mxu0 0
    %198 = vmatprep.subr.bf16.mxu0 0
    %199 = vmatpush1.bf16.msra.mxu0 0
    %200 = vmatprep.subr.bf16.mxu0 0
    %201 = vmatpush1.bf16.msra.mxu0 0
    %202 = vmatprep.subr.bf16.mxu0 0
    %203 = vmatpush1.bf16.msra.mxu0 0
    %204 = vmatprep.subr.bf16.mxu0 0
    %205 = vmatpush1.bf16.msra.mxu0 0
    %206 = vmatprep.subr.bf16.mxu0 0
    %207 = vmatpush1.bf16.msra.mxu0 0
    %208 = vmatprep.subr.bf16.mxu0 0
    %209 = vmatpush1.bf16.msra.mxu0 0
    %210 = vmatprep.subr.bf16.mxu0 0
    %211 = vmatpush1.bf16.msra.mxu0 0
    %212 = vmatprep.subr.bf16.mxu0 0
    %213 = vmatpush1.bf16.msra.mxu0 0
    %214 = vmatprep.subr.bf16.mxu0 0
    %215 = vmatpush1.bf16.msra.mxu0 0
    %216 = vmatprep.subr.bf16.mxu0 0
    %217 = vmatpush1.bf16.msra.mxu0 0
    %218 = vmatprep.subr.bf16.mxu0 0
    %219 = vmatpush1.bf16.msra.mxu0 0
    %220 = vmatprep.subr.bf16.mxu0 0
    %221 = vmatpush1.bf16.msra.mxu0 0
    %222 = vmatprep.subr.bf16.mxu0 0
    %223 = vmatpush1.bf16.msra.mxu0 0
    %224 = vmatprep.subr.bf16.mxu0 0
    %225 = vmatpush1.bf16.msra.mxu0 0
    %226 = vmatprep.mubr.bf16.mxu0 0
    %227 = vmatmul.mubr.bf16.gmra.mrb[0].mxu0 %v170
    %v228 = vpop.f32.mrb[0].mxu0
    %v229 = vadd.f32 0.0, %v228
    %v230 = vpop.f32.mrb[0].mxu0
    %v231 = vadd.f32 0.0, %v230
    %v232 = vpop.f32.mrb[0].mxu0
    %v233 = vpop.f32.mrb[0].mxu0
    %234 = vdwg.mxu0
    %235 = vmatprep.subr.bf16.mxu0 %v183
    %236 = vmatpush1.bf16.msra.mxu0 %v180
    %237 = vmatprep.subr.bf16.mxu0 0
    %238 = vmatpush1.bf16.msra.mxu0 0
    %239 = vmatprep.subr.bf16.mxu0 0
    %240 = vmatpush1.bf16.msra.mxu0 0
    %241 = vmatprep.subr.bf16.mxu0 0
    %242 = vmatpush1.bf16.msra.mxu0 0
    %243 = vmatprep.subr.bf16.mxu0 0
    %244 = vmatpush1.bf16.msra.mxu0 0
    %245 = vmatprep.subr.bf16.mxu0 0
    %246 = vmatpush1.bf16.msra.mxu0 0
    %247 = vmatprep.subr.bf16.mxu0 0
    %248 = vmatpush1.bf16.msra.mxu0 0
    %249 = vmatprep.subr.bf16.mxu0 0
    %250 = vmatpush1.bf16.msra.mxu0 0
    %251 = vmatprep.subr.bf16.mxu0 0
    %252 = vmatpush1.bf16.msra.mxu0 0
    %253 = vmatprep.subr.bf16.mxu0 0
    %254 = vmatpush1.bf16.msra.mxu0 0
    %255 = vmatprep.subr.bf16.mxu0 0
    %256 = vmatpush1.bf16.msra.mxu0 0
    %257 = vmatprep.subr.bf16.mxu0 0
    %258 = vmatpush1.bf16.msra.mxu0 0
    %259 = vmatprep.subr.bf16.mxu0 0
    %260 = vmatpush1.bf16.msra.mxu0 0
    %261 = vmatprep.subr.bf16.mxu0 0
    %262 = vmatpush1.bf16.msra.mxu0 0
    %263 = vmatprep.subr.bf16.mxu0 0
    %264 = vmatpush1.bf16.msra.mxu0 0
    %265 = vmatprep.subr.bf16.mxu0 0
    %266 = vmatpush1.bf16.msra.mxu0 0
    %267 = vmatprep.mubr.bf16.mxu0 0
    %268 = vmatmul.mubr.bf16.gmra.mrb[0].mxu0 %v170
    %v269 = vpop.f32.mrb[0].mxu0
    %v270 = vadd.f32 0.0, %v269
    %v271 = vpop.f32.mrb[0].mxu0
    %v272 = vadd.f32 0.0, %v271
    %v273 = vpop.f32.mrb[0].mxu0
    %v274 = vpop.f32.mrb[0].mxu0
    %275 = vdwg.mxu0
    %276 = vmatprep.subr.bf16.mxu0 %v189
    %277 = vmatpush1.bf16.msra.mxu0 %v186
    %278 = vmatprep.subr.bf16.mxu0 0
    %279 = vmatpush1.bf16.msra.mxu0 0
    %280 = vmatprep.subr.bf16.mxu0 0
    %281 = vmatpush1.bf16.msra.mxu0 0
    %282 = vmatprep.subr.bf16.mxu0 0
    %283 = vmatpush1.bf16.msra.mxu0 0
    %284 = vmatprep.subr.bf16.mxu0 0
    %285 = vmatpush1.bf16.msra.mxu0 0
    %286 = vmatprep.subr.bf16.mxu0 0
    %287 = vmatpush1.bf16.msra.mxu0 0
    %288 = vmatprep.subr.bf16.mxu0 0
    %289 = vmatpush1.bf16.msra.mxu0 0
    %290 = vmatprep.subr.bf16.mxu0 0
    %291 = vmatpush1.bf16.msra.mxu0 0
    %292 = vmatprep.subr.bf16.mxu0 0
    %293 = vmatpush1.bf16.msra.mxu0 0
    %294 = vmatprep.subr.bf16.mxu0 0
    %295 = vmatpush1.bf16.msra.mxu0 0
    %296 = vmatprep.subr.bf16.mxu0 0
    %297 = vmatpush1.bf16.msra.mxu0 0
    %298 = vmatprep.subr.bf16.mxu0 0
    %299 = vmatpush1.bf16.msra.mxu0 0
    %300 = vmatprep.subr.bf16.mxu0 0
    %301 = vmatpush1.bf16.msra.mxu0 0
    %302 = vmatprep.subr.bf16.mxu0 0
    %303 = vmatpush1.bf16.msra.mxu0 0
    %304 = vmatprep.subr.bf16.mxu0 0
    %305 = vmatpush1.bf16.msra.mxu0 0
    %306 = vmatprep.subr.bf16.mxu0 0
    %307 = vmatpush1.bf16.msra.mxu0 0
    %308 = vmatprep.mubr.bf16.mxu0 0
    %309 = vmatmul.mubr.bf16.gmra.mrb[0].mxu0 %v170
    %v310 = vpop.f32.mrb[0].mxu0
    %v311 = vadd.f32 0.0, %v310
    %v312 = vpop.f32.mrb[0].mxu0
    %v313 = vadd.f32 0.0, %v312
    %v314 = vpop.f32.mrb[0].mxu0
    %v315 = vpop.f32.mrb[0].mxu0
    %316 = vdwg.mxu0
    %317 = vmatprep.subr.bf16.mxu0 0
    %318 = vmatpush1.bf16.msra.mxu0 %v192
    %319 = vmatprep.subr.bf16.mxu0 0
    %320 = vmatpush1.bf16.msra.mxu0 0
    %321 = vmatprep.subr.bf16.mxu0 0
    %322 = vmatpush1.bf16.msra.mxu0 0
    %323 = vmatprep.subr.bf16.mxu0 0
    %324 = vmatpush1.bf16.msra.mxu0 0
    %325 = vmatprep.subr.bf16.mxu0 0
    %326 = vmatpush1.bf16.msra.mxu0 0
    %327 = vmatprep.subr.bf16.mxu0 0
    %328 = vmatpush1.bf16.msra.mxu0 0
    %329 = vmatprep.subr.bf16.mxu0 0
    %330 = vmatpush1.bf16.msra.mxu0 0
    %331 = vmatprep.subr.bf16.mxu0 0
    %332 = vmatpush1.bf16.msra.mxu0 0
    %333 = vmatprep.subr.bf16.mxu0 0
    %334 = vmatpush1.bf16.msra.mxu0 0
    %335 = vmatprep.subr.bf16.mxu0 0
    %336 = vmatpush1.bf16.msra.mxu0 0
    %337 = vmatprep.subr.bf16.mxu0 0
    %338 = vmatpush1.bf16.msra.mxu0 0
    %339 = vmatprep.subr.bf16.mxu0 0
    %340 = vmatpush1.bf16.msra.mxu0 0
    %341 = vmatprep.subr.bf16.mxu0 0
    %342 = vmatpush1.bf16.msra.mxu0 0
    %343 = vmatprep.subr.bf16.mxu0 0
    %344 = vmatpush1.bf16.msra.mxu0 0
    %345 = vmatprep.subr.bf16.mxu0 0
    %346 = vmatpush1.bf16.msra.mxu0 0
    %347 = vmatprep.subr.bf16.mxu0 0
    %348 = vmatpush1.bf16.msra.mxu0 0
    %349 = vmatprep.mubr.bf16.mxu0 0
    %350 = vmatmul.mubr.bf16.gmra.mrb[0].mxu0 %v170
    %v351 = vpop.f32.mrb[0].mxu0
    %v352 = vadd.f32 0.0, %v351
    %v353 = vpop.f32.mrb[0].mxu0
    %v354 = vpop.f32.mrb[0].mxu0
    %v355 = vpop.f32.mrb[0].mxu0
    %356 = vdwg.mxu0
    %v369 = vunpack.c.l.b16 %v134
    %v370 = vunpack.c.h.b16 %v134
    %v371 = vunpack.c.l.b16 %v135
    %v372 = vunpack.c.h.b16 %v135
    %v373 = vunpack.c.l.b16 %v136
    %v374 = vunpack.c.h.b16 %v136
    %v375 = vunpack.c.l.b16 %v137
    %v376 = vunpack.c.l.b16 %v138
    %v377 = vunpack.c.h.b16 %v138
    %v378 = vunpack.c.l.b16 %v139
    %v379 = vunpack.c.h.b16 %v139
    %v380 = vunpack.c.l.b16 %v140
    %v381 = vunpack.c.h.b16 %v140
    %v382 = vunpack.c.l.b16 %v141
    %v383 = vunpack.c.l.b16 %v142
    %v384 = vunpack.c.h.b16 %v142
    %v385 = vunpack.c.l.b16 %v143
    %v386 = vunpack.c.h.b16 %v143
    %v387 = vunpack.c.l.b16 %v144
    %v388 = vunpack.c.h.b16 %v144
    %v389 = vunpack.c.l.b16 %v145
    %v390 = vpack.c.b16 %v376, %v369
    %v391 = vpack.c.b16 %v377, %v370
    %v392 = vpack.c.b16 %v378, %v371
    %v393 = vpack.c.b16 %v379, %v372
    %v394 = vpack.c.b16 %v380, %v373
    %v395 = vpack.c.b16 %v381, %v374
    %v396 = vpack.c.b16 %v382, %v375
    %v397 = vpack.c.b16 %v383, %v383
    %v398 = vpack.c.b16 %v384, %v384
    %v399 = vpack.c.b16 %v385, %v385
    %v400 = vpack.c.b16 %v386, %v386
    %v401 = vpack.c.b16 %v387, %v387
    %v402 = vpack.c.b16 %v388, %v388
    %v403 = vpack.c.b16 %v389, %v389
    %vm411 = vcmask 138240
    %v413 = vsel %vm411, %v131, 0
    %vm415 = vcmask 1040384
    %v416 = vsel 0, 4294967295, 65535
    %v417 = vsel %vm415, %v416, 0
    %v419 = vand.u32 %v397, %v417
    %v422 = vand.u32 %v398, %v417
    %v425 = vand.u32 %v399, %v417
    %v428 = vand.u32 %v400, %v417
    %v431 = vand.u32 %v401, %v417
    %v434 = vand.u32 %v402, %v417
    %v437 = vand.u32 %v403, %v417
    %439 = vmatprep.subr.bf16.mxu0 %v391
    %440 = vmatpush1.bf16.msra.mxu0 %v390
    %441 = vmatprep.subr.bf16.mxu0 %v422
    %442 = vmatpush1.bf16.msra.mxu0 %v419
    %443 = vmatprep.subr.bf16.mxu0 0
    %444 = vmatpush1.bf16.msra.mxu0 0
    %445 = vmatprep.subr.bf16.mxu0 0
    %446 = vmatpush1.bf16.msra.mxu0 0
    %447 = vmatprep.subr.bf16.mxu0 0
    %448 = vmatpush1.bf16.msra.mxu0 0
    %449 = vmatprep.subr.bf16.mxu0 0
    %450 = vmatpush1.bf16.msra.mxu0 0
    %451 = vmatprep.subr.bf16.mxu0 0
    %452 = vmatpush1.bf16.msra.mxu0 0
    %453 = vmatprep.subr.bf16.mxu0 0
    %454 = vmatpush1.bf16.msra.mxu0 0
    %455 = vmatprep.subr.bf16.mxu0 0
    %456 = vmatpush1.bf16.msra.mxu0 0
    %457 = vmatprep.subr.bf16.mxu0 0
    %458 = vmatpush1.bf16.msra.mxu0 0
    %459 = vmatprep.subr.bf16.mxu0 0
    %460 = vmatpush1.bf16.msra.mxu0 0
    %461 = vmatprep.subr.bf16.mxu0 0
    %462 = vmatpush1.bf16.msra.mxu0 0
    %463 = vmatprep.subr.bf16.mxu0 0
    %464 = vmatpush1.bf16.msra.mxu0 0
    %465 = vmatprep.subr.bf16.mxu0 0
    %466 = vmatpush1.bf16.msra.mxu0 0
    %467 = vmatprep.subr.bf16.mxu0 0
    %468 = vmatpush1.bf16.msra.mxu0 0
    %469 = vmatprep.subr.bf16.mxu0 0
    %470 = vmatpush1.bf16.msra.mxu0 0
    %471 = vmatprep.mubr.bf16.mxu0 0
    %472 = vmatmul.mubr.bf16.gmra.mrb[0].mxu0 %v413
    %v473 = vpop.f32.mrb[0].mxu0
    %v474 = vadd.f32 %v229, %v473
    %v475 = vpop.f32.mrb[0].mxu0
    %v476 = vadd.f32 %v231, %v475
    %v477 = vpop.f32.mrb[0].mxu0
    %v478 = vpop.f32.mrb[0].mxu0
    %479 = vdwg.mxu0
    %480 = vmatprep.subr.bf16.mxu0 %v393
    %481 = vmatpush1.bf16.msra.mxu0 %v392
    %482 = vmatprep.subr.bf16.mxu0 %v428
    %483 = vmatpush1.bf16.msra.mxu0 %v425
    %484 = vmatprep.subr.bf16.mxu0 0
    %485 = vmatpush1.bf16.msra.mxu0 0
    %486 = vmatprep.subr.bf16.mxu0 0
    %487 = vmatpush1.bf16.msra.mxu0 0
    %488 = vmatprep.subr.bf16.mxu0 0
    %489 = vmatpush1.bf16.msra.mxu0 0
    %490 = vmatprep.subr.bf16.mxu0 0
    %491 = vmatpush1.bf16.msra.mxu0 0
    %492 = vmatprep.subr.bf16.mxu0 0
    %493 = vmatpush1.bf16.msra.mxu0 0
    %494 = vmatprep.subr.bf16.mxu0 0
    %495 = vmatpush1.bf16.msra.mxu0 0
    %496 = vmatprep.subr.bf16.mxu0 0
    %497 = vmatpush1.bf16.msra.mxu0 0
    %498 = vmatprep.subr.bf16.mxu0 0
    %499 = vmatpush1.bf16.msra.mxu0 0
    %500 = vmatprep.subr.bf16.mxu0 0
    %501 = vmatpush1.bf16.msra.mxu0 0
    %502 = vmatprep.subr.bf16.mxu0 0
    %503 = vmatpush1.bf16.msra.mxu0 0
    %504 = vmatprep.subr.bf16.mxu0 0
    %505 = vmatpush1.bf16.msra.mxu0 0
    %506 = vmatprep.subr.bf16.mxu0 0
    %507 = vmatpush1.bf16.msra.mxu0 0
    %508 = vmatprep.subr.bf16.mxu0 0
    %509 = vmatpush1.bf16.msra.mxu0 0
    %510 = vmatprep.subr.bf16.mxu0 0
    %511 = vmatpush1.bf16.msra.mxu0 0
    %512 = vmatprep.mubr.bf16.mxu0 0
    %513 = vmatmul.mubr.bf16.gmra.mrb[0].mxu0 %v413
    %v514 = vpop.f32.mrb[0].mxu0
    %v515 = vadd.f32 %v270, %v514
    %v516 = vpop.f32.mrb[0].mxu0
    %v517 = vadd.f32 %v272, %v516
    %v518 = vpop.f32.mrb[0].mxu0
    %v519 = vpop.f32.mrb[0].mxu0
    %520 = vdwg.mxu0
    %521 = vmatprep.subr.bf16.mxu0 %v395
    %522 = vmatpush1.bf16.msra.mxu0 %v394
    %523 = vmatprep.subr.bf16.mxu0 %v434
    %524 = vmatpush1.bf16.msra.mxu0 %v431
    %525 = vmatprep.subr.bf16.mxu0 0
    %526 = vmatpush1.bf16.msra.mxu0 0
    %527 = vmatprep.subr.bf16.mxu0 0
    %528 = vmatpush1.bf16.msra.mxu0 0
    %529 = vmatprep.subr.bf16.mxu0 0
    %530 = vmatpush1.bf16.msra.mxu0 0
    %531 = vmatprep.subr.bf16.mxu0 0
    %532 = vmatpush1.bf16.msra.mxu0 0
    %533 = vmatprep.subr.bf16.mxu0 0
    %534 = vmatpush1.bf16.msra.mxu0 0
    %535 = vmatprep.subr.bf16.mxu0 0
    %536 = vmatpush1.bf16.msra.mxu0 0
    %537 = vmatprep.subr.bf16.mxu0 0
    %538 = vmatpush1.bf16.msra.mxu0 0
    %539 = vmatprep.subr.bf16.mxu0 0
    %540 = vmatpush1.bf16.msra.mxu0 0
    %541 = vmatprep.subr.bf16.mxu0 0
    %542 = vmatpush1.bf16.msra.mxu0 0
    %543 = vmatprep.subr.bf16.mxu0 0
    %544 = vmatpush1.bf16.msra.mxu0 0
    %545 = vmatprep.subr.bf16.mxu0 0
    %546 = vmatpush1.bf16.msra.mxu0 0
    %547 = vmatprep.subr.bf16.mxu0 0
    %548 = vmatpush1.bf16.msra.mxu0 0
    %549 = vmatprep.subr.bf16.mxu0 0
    %550 = vmatpush1.bf16.msra.mxu0 0
    %551 = vmatprep.subr.bf16.mxu0 0
    %552 = vmatpush1.bf16.msra.mxu0 0
    %553 = vmatprep.mubr.bf16.mxu0 0
    %554 = vmatmul.mubr.bf16.gmra.mrb[0].mxu0 %v413
    %v555 = vpop.f32.mrb[0].mxu0
    %v556 = vadd.f32 %v311, %v555
    %v557 = vpop.f32.mrb[0].mxu0
    %v558 = vadd.f32 %v313, %v557
    %v559 = vpop.f32.mrb[0].mxu0
    %v560 = vpop.f32.mrb[0].mxu0
    %561 = vdwg.mxu0
    %562 = vmatprep.subr.bf16.mxu0 0
    %563 = vmatpush1.bf16.msra.mxu0 %v396
    %564 = vmatprep.subr.bf16.mxu0 0
    %565 = vmatpush1.bf16.msra.mxu0 %v437
    %566 = vmatprep.subr.bf16.mxu0 0
    %567 = vmatpush1.bf16.msra.mxu0 0
    %568 = vmatprep.subr.bf16.mxu0 0
    %569 = vmatpush1.bf16.msra.mxu0 0
    %570 = vmatprep.subr.bf16.mxu0 0
    %571 = vmatpush1.bf16.msra.mxu0 0
    %572 = vmatprep.subr.bf16.mxu0 0
    %573 = vmatpush1.bf16.msra.mxu0 0
    %574 = vmatprep.subr.bf16.mxu0 0
    %575 = vmatpush1.bf16.msra.mxu0 0
    %576 = vmatprep.subr.bf16.mxu0 0
    %577 = vmatpush1.bf16.msra.mxu0 0
    %578 = vmatprep.subr.bf16.mxu0 0
    %579 = vmatpush1.bf16.msra.mxu0 0
    %580 = vmatprep.subr.bf16.mxu0 0
    %581 = vmatpush1.bf16.msra.mxu0 0
    %582 = vmatprep.subr.bf16.mxu0 0
    %583 = vmatpush1.bf16.msra.mxu0 0
    %584 = vmatprep.subr.bf16.mxu0 0
    %585 = vmatpush1.bf16.msra.mxu0 0
    %586 = vmatprep.subr.bf16.mxu0 0
    %587 = vmatpush1.bf16.msra.mxu0 0
    %588 = vmatprep.subr.bf16.mxu0 0
    %589 = vmatpush1.bf16.msra.mxu0 0
    %590 = vmatprep.subr.bf16.mxu0 0
    %591 = vmatpush1.bf16.msra.mxu0 0
    %592 = vmatprep.subr.bf16.mxu0 0
    %593 = vmatpush1.bf16.msra.mxu0 0
    %594 = vmatprep.mubr.bf16.mxu0 0
    %595 = vmatmul.mubr.bf16.gmra.mrb[0].mxu0 %v413
    %v596 = vpop.f32.mrb[0].mxu0
    %v597 = vadd.f32 %v352, %v596
    %v598 = vpop.f32.mrb[0].mxu0
    %v599 = vpop.f32.mrb[0].mxu0
    %v600 = vpop.f32.mrb[0].mxu0
    %601 = vdwg.mxu0
    %v602 = vld [vmem:[#allocation9] sm:$0xff]
    %v604 = vlaneseq
    %v605 = vshrl.u32 %v604, 7
    %v606 = vsub.s32 0, %v605
    %v607 = vrot.slane %v602, %v606
    %v608 = vlaneseq
    %v609 = vshrl.u32 %v608, 7
    %v610 = vsub.s32 1, %v609
    %v611 = vrot.slane %v602, %v610
    %v612 = vlaneseq
    %v613 = vshrl.u32 %v612, 7
    %v614 = vsub.s32 2, %v613
    %v615 = vrot.slane %v602, %v614
    %v616 = vlaneseq
    %v617 = vshrl.u32 %v616, 7
    %v618 = vsub.s32 3, %v617
    %v619 = vrot.slane %v602, %v618
    %v620 = vlaneseq
    %v621 = vshrl.u32 %v620, 7
    %v622 = vsub.s32 4, %v621
    %v623 = vrot.slane %v602, %v622
    %v624 = vlaneseq
    %v625 = vshrl.u32 %v624, 7
    %v626 = vsub.s32 5, %v625
    %v627 = vrot.slane %v602, %v626
    %v628 = vlaneseq
    %v629 = vshrl.u32 %v628, 7
    %v630 = vsub.s32 6, %v629
    %v631 = vrot.slane %v602, %v630
    %v639 = vadd.f32 %v474, %v607
    %v640 = vadd.f32 %v476, %v611
    %v641 = vadd.f32 %v515, %v615
    %v642 = vadd.f32 %v517, %v619
    %v643 = vadd.f32 %v556, %v623
    %v644 = vadd.f32 %v558, %v627
    %v645 = vadd.f32 %v597, %v631
    %v646 = vmax.f32 %v639, 0.0
    %v647 = vmax.f32 %v640, 0.0
    %v648 = vmax.f32 %v641, 0.0
    %v649 = vmax.f32 %v642, 0.0
    %v650 = vmax.f32 %v643, 0.0
    %v651 = vmax.f32 %v644, 0.0
    %v652 = vmax.f32 %v645, 0.0
    %v653 = vpack.c.bf16 %v646, %v646
    %v654 = vpack.c.bf16 %v647, %v647
    %v655 = vpack.c.bf16 %v648, %v648
    %v656 = vpack.c.bf16 %v649, %v649
    %v657 = vpack.c.bf16 %v650, %v650
    %v658 = vpack.c.bf16 %v651, %v651
    %v659 = vpack.c.bf16 %v652, %v652
    %v660 = vld [vmem:[#allocation10] sm:$0xff]
    %v661 = vld [vmem:[#allocation10 + $0x8] sm:$0xff]
    %v662 = vld [vmem:[#allocation10 + $0x10] sm:$0xf]
    %v663 = vld [vmem:[#allocation10 + $0x14] sm:$0xff]
    %v664 = vld [vmem:[#allocation10 + $0x1c] sm:$0xff]
    %v665 = vld [vmem:[#allocation10 + $0x24] sm:$0xf]
    %v666 = vld [vmem:[#allocation10 + $0x28] sm:$0xff]
    %v667 = vld [vmem:[#allocation10 + $0x30] sm:$0xff]
    %v668 = vld [vmem:[#allocation10 + $0x38] sm:$0xf]
    %v669 = vld [vmem:[#allocation10 + $0x3c] sm:$0xff]
    %v670 = vld [vmem:[#allocation10 + $0x44] sm:$0xff]
    %v671 = vld [vmem:[#allocation10 + $0x4c] sm:$0xf]
    %v672 = vld [vmem:[#allocation10 + $0x50] sm:$0xff]
    %v673 = vld [vmem:[#allocation10 + $0x58] sm:$0xff]
    %v674 = vld [vmem:[#allocation10 + $0x60] sm:$0xf]
    %v675 = vld [vmem:[#allocation10 + $0x64] sm:$0xff]
    %v676 = vld [vmem:[#allocation10 + $0x6c] sm:$0xff]
    %v677 = vld [vmem:[#allocation10 + $0x74] sm:$0xf]
    %v678 = vld [vmem:[#allocation10 + $0x78] sm:$0xff]
    %v679 = vld [vmem:[#allocation10 + $0x80] sm:$0xff]
    %v680 = vld [vmem:[#allocation10 + $0x88] sm:$0xf]
    %v681 = vld [vmem:[#allocation10 + $0x8c] sm:$0xff]
    %v682 = vld [vmem:[#allocation10 + $0x94] sm:$0xff]
    %v683 = vld [vmem:[#allocation10 + $0x9c] sm:$0xf]
    %v684 = vld [vmem:[#allocation10 + $0xa0] sm:$0xff]
    %v685 = vld [vmem:[#allocation10 + $0xa8] sm:$0xff]
    %v686 = vld [vmem:[#allocation10 + $0xb0] sm:$0xf]
    %v687 = vld [vmem:[#allocation10 + $0xb4] sm:$0xff]
    %v688 = vld [vmem:[#allocation10 + $0xbc] sm:$0xff]
    %v689 = vld [vmem:[#allocation10 + $0xc4] sm:$0xf]
    %v690 = vld [vmem:[#allocation10 + $0xc8] sm:$0xff]
    %v691 = vld [vmem:[#allocation10 + $0xd0] sm:$0xff]
    %v692 = vld [vmem:[#allocation10 + $0xd8] sm:$0xf]
    %v693 = vld [vmem:[#allocation10 + $0xdc] sm:$0xff]
    %v694 = vld [vmem:[#allocation10 + $0xe4] sm:$0xff]
    %v695 = vld [vmem:[#allocation10 + $0xec] sm:$0xf]
    %v696 = vld [vmem:[#allocation10 + $0xf0] sm:$0xff]
    %v697 = vld [vmem:[#allocation10 + $0xf8] sm:$0xff]
    %v698 = vld [vmem:[#allocation10 + $0x100] sm:$0xf]
    %v699 = vld [vmem:[#allocation10 + $0x104] sm:$0xff]
    %v700 = vld [vmem:[#allocation10 + $0x10c] sm:$0xff]
    %v701 = vld [vmem:[#allocation10 + $0x114] sm:$0xf]
    %v702 = vld [vmem:[#allocation10 + $0x118] sm:$0xff]
    %v703 = vld [vmem:[#allocation10 + $0x120] sm:$0xff]
    %v704 = vld [vmem:[#allocation10 + $0x128] sm:$0xf]
    %v705 = vld [vmem:[#allocation10 + $0x12c] sm:$0xff]
    %v706 = vld [vmem:[#allocation10 + $0x134] sm:$0xff]
    %v707 = vld [vmem:[#allocation10 + $0x13c] sm:$0xf]
    %v708 = vld [vmem:[#allocation10 + $0x140] sm:$0xff]
    %v709 = vld [vmem:[#allocation10 + $0x148] sm:$0xff]
    %v710 = vld [vmem:[#allocation10 + $0x150] sm:$0xf]
    %v711 = vld [vmem:[#allocation10 + $0x154] sm:$0xff]
    %v712 = vld [vmem:[#allocation10 + $0x15c] sm:$0xff]
    %v713 = vld [vmem:[#allocation10 + $0x164] sm:$0xf]
    %v714 = vld [vmem:[#allocation10 + $0x168] sm:$0xff]
    %v715 = vld [vmem:[#allocation10 + $0x170] sm:$0xff]
    %v716 = vld [vmem:[#allocation10 + $0x178] sm:$0xf]
    %v717 = vld [vmem:[#allocation10 + $0x17c] sm:$0xff]
    %v718 = vld [vmem:[#allocation10 + $0x184] sm:$0xff]
    %v719 = vld [vmem:[#allocation10 + $0x18c] sm:$0xf]
    %v720 = vld [vmem:[#allocation10 + $0x190] sm:$0xff]
    %v721 = vld [vmem:[#allocation10 + $0x198] sm:$0xff]
    %v722 = vld [vmem:[#allocation10 + $0x1a0] sm:$0xf]
    %v723 = vld [vmem:[#allocation10 + $0x1a4] sm:$0xff]
    %v724 = vld [vmem:[#allocation10 + $0x1ac] sm:$0xff]
    %v725 = vld [vmem:[#allocation10 + $0x1b4] sm:$0xf]
    %v726 = vld [vmem:[#allocation10 + $0x1b8] sm:$0xff]
    %v727 = vld [vmem:[#allocation10 + $0x1c0] sm:$0xff]
    %v728 = vld [vmem:[#allocation10 + $0x1c8] sm:$0xf]
    %v729 = vld [vmem:[#allocation10 + $0x1cc] sm:$0xff]
    %v730 = vld [vmem:[#allocation10 + $0x1d4] sm:$0xff]
    %v731 = vld [vmem:[#allocation10 + $0x1dc] sm:$0xf]
    %v732 = vld [vmem:[#allocation10 + $0x1e0] sm:$0xff]
    %v733 = vld [vmem:[#allocation10 + $0x1e8] sm:$0xff]
    %v734 = vld [vmem:[#allocation10 + $0x1f0] sm:$0xf]
    %v735 = vld [vmem:[#allocation10 + $0x1f4] sm:$0xff]
    %v736 = vld [vmem:[#allocation10 + $0x1fc] sm:$0xff]
    %v737 = vld [vmem:[#allocation10 + $0x204] sm:$0xf]
    %v738 = vld [vmem:[#allocation10 + $0x208] sm:$0xff]
    %v739 = vld [vmem:[#allocation10 + $0x210] sm:$0xff]
    %v740 = vld [vmem:[#allocation10 + $0x218] sm:$0xf]
    %v741 = vld [vmem:[#allocation10 + $0x21c] sm:$0xff]
    %v742 = vld [vmem:[#allocation10 + $0x224] sm:$0xff]
    %v743 = vld [vmem:[#allocation10 + $0x22c] sm:$0xf]
    %v744 = vld [vmem:[#allocation10 + $0x230] sm:$0xff]
    %v745 = vld [vmem:[#allocation10 + $0x238] sm:$0xff]
    %v746 = vld [vmem:[#allocation10 + $0x240] sm:$0xf]
    %v747 = vld [vmem:[#allocation10 + $0x244] sm:$0xff]
    %v748 = vld [vmem:[#allocation10 + $0x24c] sm:$0xff]
    %v749 = vld [vmem:[#allocation10 + $0x254] sm:$0xf]
    %v750 = vld [vmem:[#allocation10 + $0x258] sm:$0xff]
    %v751 = vld [vmem:[#allocation10 + $0x260] sm:$0xff]
    %v752 = vld [vmem:[#allocation10 + $0x268] sm:$0xf]
    %v753 = vld [vmem:[#allocation10 + $0x26c] sm:$0xff]
    %v754 = vld [vmem:[#allocation10 + $0x274] sm:$0xff]
    %v755 = vld [vmem:[#allocation10 + $0x27c] sm:$0xf]
    %v756 = vld [vmem:[#allocation10 + $0x280] sm:$0xff]
    %v757 = vld [vmem:[#allocation10 + $0x288] sm:$0xff]
    %v758 = vld [vmem:[#allocation10 + $0x290] sm:$0xf]
    %v759 = vld [vmem:[#allocation10 + $0x294] sm:$0xff]
    %v760 = vld [vmem:[#allocation10 + $0x29c] sm:$0xff]
    %v761 = vld [vmem:[#allocation10 + $0x2a4] sm:$0xf]
    %v762 = vld [vmem:[#allocation10 + $0x2a8] sm:$0xff]
    %v763 = vld [vmem:[#allocation10 + $0x2b0] sm:$0xff]
    %v764 = vld [vmem:[#allocation10 + $0x2b8] sm:$0xf]
    %v765 = vld [vmem:[#allocation10 + $0x2bc] sm:$0xff]
    %v766 = vld [vmem:[#allocation10 + $0x2c4] sm:$0xff]
    %v767 = vld [vmem:[#allocation10 + $0x2cc] sm:$0xf]
    %v768 = vld [vmem:[#allocation10 + $0x2d0] sm:$0xff]
    %v769 = vld [vmem:[#allocation10 + $0x2d8] sm:$0xff]
    %v770 = vld [vmem:[#allocation10 + $0x2e0] sm:$0xf]
    %v771 = vld [vmem:[#allocation10 + $0x2e4] sm:$0xff]
    %v772 = vld [vmem:[#allocation10 + $0x2ec] sm:$0xff]
    %v773 = vld [vmem:[#allocation10 + $0x2f4] sm:$0xf]
    %v774 = vld [vmem:[#allocation10 + $0x2f8] sm:$0xff]
    %v775 = vld [vmem:[#allocation10 + $0x300] sm:$0xff]
    %v776 = vld [vmem:[#allocation10 + $0x308] sm:$0xf]
    %v777 = vld [vmem:[#allocation10 + $0x30c] sm:$0xff]
    %v778 = vld [vmem:[#allocation10 + $0x314] sm:$0xff]
    %v779 = vld [vmem:[#allocation10 + $0x31c] sm:$0xf]
    %v780 = vld [vmem:[#allocation10 + $0x320] sm:$0xff]
    %v781 = vld [vmem:[#allocation10 + $0x328] sm:$0xff]
    %v782 = vld [vmem:[#allocation10 + $0x330] sm:$0xf]
    %v783 = vld [vmem:[#allocation10 + $0x334] sm:$0xff]
    %v784 = vld [vmem:[#allocation10 + $0x33c] sm:$0xff]
    %v785 = vld [vmem:[#allocation10 + $0x344] sm:$0xf]
    %v786 = vld [vmem:[#allocation10 + $0x348] sm:$0xff]
    %v787 = vld [vmem:[#allocation10 + $0x350] sm:$0xff]
    %v788 = vld [vmem:[#allocation10 + $0x358] sm:$0xf]
    %v789 = vld [vmem:[#allocation10 + $0x35c] sm:$0xff]
    %v790 = vld [vmem:[#allocation10 + $0x364] sm:$0xff]
    %v791 = vld [vmem:[#allocation10 + $0x36c] sm:$0xf]
    %v792 = vld [vmem:[#allocation10 + $0x370] sm:$0xff]
    %v793 = vld [vmem:[#allocation10 + $0x378] sm:$0xff]
    %v794 = vld [vmem:[#allocation10 + $0x380] sm:$0xf]
    %v795 = vld [vmem:[#allocation10 + $0x384] sm:$0xff]
    %v796 = vld [vmem:[#allocation10 + $0x38c] sm:$0xff]
    %v797 = vld [vmem:[#allocation10 + $0x394] sm:$0xf]
    %v798 = vld [vmem:[#allocation10 + $0x398] sm:$0xff]
    %v799 = vld [vmem:[#allocation10 + $0x3a0] sm:$0xff]
    %v800 = vld [vmem:[#allocation10 + $0x3a8] sm:$0xf]
    %v801 = vld [vmem:[#allocation10 + $0x3ac] sm:$0xff]
    %v802 = vld [vmem:[#allocation10 + $0x3b4] sm:$0xff]
    %v803 = vld [vmem:[#allocation10 + $0x3bc] sm:$0xf]
    %v804 = vld [vmem:[#allocation10 + $0x3c0] sm:$0xff]
    %v805 = vld [vmem:[#allocation10 + $0x3c8] sm:$0xff]
    %v806 = vld [vmem:[#allocation10 + $0x3d0] sm:$0xf]
    %v807 = vld [vmem:[#allocation10 + $0x3d4] sm:$0xff]
    %v808 = vld [vmem:[#allocation10 + $0x3dc] sm:$0xff]
    %v809 = vld [vmem:[#allocation10 + $0x3e4] sm:$0xf]
    %v810 = vld [vmem:[#allocation10 + $0x3e8] sm:$0xff]
    %v811 = vld [vmem:[#allocation10 + $0x3f0] sm:$0xff]
    %v812 = vld [vmem:[#allocation10 + $0x3f8] sm:$0xf]
    %v813 = vld [vmem:[#allocation10 + $0x3fc] sm:$0xff]
    %v814 = vld [vmem:[#allocation10 + $0x404] sm:$0xff]
    %v815 = vld [vmem:[#allocation10 + $0x40c] sm:$0xf]
    %v816 = vld [vmem:[#allocation10 + $0x410] sm:$0xff]
    %v817 = vld [vmem:[#allocation10 + $0x418] sm:$0xff]
    %v818 = vld [vmem:[#allocation10 + $0x420] sm:$0xf]
    %v819 = vld [vmem:[#allocation10 + $0x424] sm:$0xff]
    %v820 = vld [vmem:[#allocation10 + $0x42c] sm:$0xff]
    %v821 = vld [vmem:[#allocation10 + $0x434] sm:$0xf]
    %v822 = vld [vmem:[#allocation10 + $0x438] sm:$0xff]
    %v823 = vld [vmem:[#allocation10 + $0x440] sm:$0xff]
    %v824 = vld [vmem:[#allocation10 + $0x448] sm:$0xf]
    %v825 = vld [vmem:[#allocation10 + $0x44c] sm:$0xff]
    %v826 = vld [vmem:[#allocation10 + $0x454] sm:$0xff]
    %v827 = vld [vmem:[#allocation10 + $0x45c] sm:$0xf]
    %v828 = vld [vmem:[#allocation10 + $0x460] sm:$0xff]
    %v829 = vld [vmem:[#allocation10 + $0x468] sm:$0xff]
    %v830 = vld [vmem:[#allocation10 + $0x470] sm:$0xf]
    %v831 = vld [vmem:[#allocation10 + $0x474] sm:$0xff]
    %v832 = vld [vmem:[#allocation10 + $0x47c] sm:$0xff]
    %v833 = vld [vmem:[#allocation10 + $0x484] sm:$0xf]
    %v834 = vld [vmem:[#allocation10 + $0x488] sm:$0xff]
    %v835 = vld [vmem:[#allocation10 + $0x490] sm:$0xff]
    %v836 = vld [vmem:[#allocation10 + $0x498] sm:$0xf]
    %v837 = vld [vmem:[#allocation10 + $0x49c] sm:$0xff]
    %v838 = vld [vmem:[#allocation10 + $0x4a4] sm:$0xff]
    %v839 = vld [vmem:[#allocation10 + $0x4ac] sm:$0xf]
    %v840 = vld [vmem:[#allocation10 + $0x4b0] sm:$0xff]
    %v841 = vld [vmem:[#allocation10 + $0x4b8] sm:$0xff]
    %v842 = vld [vmem:[#allocation10 + $0x4c0] sm:$0xf]
    %v843 = vld [vmem:[#allocation10 + $0x4c4] sm:$0xff]
    %v844 = vld [vmem:[#allocation10 + $0x4cc] sm:$0xff]
    %v845 = vld [vmem:[#allocation10 + $0x4d4] sm:$0xf]
    %v846 = vld [vmem:[#allocation10 + $0x4d8] sm:$0xff]
    %v847 = vld [vmem:[#allocation10 + $0x4e0] sm:$0xff]
    %v848 = vld [vmem:[#allocation10 + $0x4e8] sm:$0xf]
    %v849 = vld [vmem:[#allocation10 + $0x4ec] sm:$0xff]
    %v850 = vld [vmem:[#allocation10 + $0x4f4] sm:$0xff]
    %v851 = vld [vmem:[#allocation10 + $0x4fc] sm:$0xf]
    %v852 = vld [vmem:[#allocation10 + $0x500] sm:$0xff]
    %v853 = vld [vmem:[#allocation10 + $0x508] sm:$0xff]
    %v854 = vld [vmem:[#allocation10 + $0x510] sm:$0xf]
    %v855 = vld [vmem:[#allocation10 + $0x514] sm:$0xff]
    %v856 = vld [vmem:[#allocation10 + $0x51c] sm:$0xff]
    %v857 = vld [vmem:[#allocation10 + $0x524] sm:$0xf]
    %v858 = vld [vmem:[#allocation10 + $0x528] sm:$0xff]
    %v859 = vld [vmem:[#allocation10 + $0x530] sm:$0xff]
    %v860 = vld [vmem:[#allocation10 + $0x538] sm:$0xf]
    %v861 = vld [vmem:[#allocation10 + $0x53c] sm:$0xff]
    %v862 = vld [vmem:[#allocation10 + $0x544] sm:$0xff]
    %v863 = vld [vmem:[#allocation10 + $0x54c] sm:$0xf]
    %v864 = vld [vmem:[#allocation10 + $0x550] sm:$0xff]
    %v865 = vld [vmem:[#allocation10 + $0x558] sm:$0xff]
    %v866 = vld [vmem:[#allocation10 + $0x560] sm:$0xf]
    %v867 = vld [vmem:[#allocation10 + $0x564] sm:$0xff]
    %v868 = vld [vmem:[#allocation10 + $0x56c] sm:$0xff]
    %v869 = vld [vmem:[#allocation10 + $0x574] sm:$0xf]
    %v870 = vld [vmem:[#allocation10 + $0x578] sm:$0xff]
    %v871 = vld [vmem:[#allocation10 + $0x580] sm:$0xff]
    %v872 = vld [vmem:[#allocation10 + $0x588] sm:$0xf]
    %v873 = vld [vmem:[#allocation10 + $0x58c] sm:$0xff]
    %v874 = vld [vmem:[#allocation10 + $0x594] sm:$0xff]
    %v875 = vld [vmem:[#allocation10 + $0x59c] sm:$0xf]
    %v876 = vld [vmem:[#allocation10 + $0x5a0] sm:$0xff]
    %v877 = vld [vmem:[#allocation10 + $0x5a8] sm:$0xff]
    %v878 = vld [vmem:[#allocation10 + $0x5b0] sm:$0xf]
    %v879 = vld [vmem:[#allocation10 + $0x5b4] sm:$0xff]
    %v880 = vld [vmem:[#allocation10 + $0x5bc] sm:$0xff]
    %v881 = vld [vmem:[#allocation10 + $0x5c4] sm:$0xf]
    %v882 = vld [vmem:[#allocation10 + $0x5c8] sm:$0xff]
    %v883 = vld [vmem:[#allocation10 + $0x5d0] sm:$0xff]
    %v884 = vld [vmem:[#allocation10 + $0x5d8] sm:$0xf]
    %v885 = vld [vmem:[#allocation10 + $0x5dc] sm:$0xff]
    %v886 = vld [vmem:[#allocation10 + $0x5e4] sm:$0xff]
    %v887 = vld [vmem:[#allocation10 + $0x5ec] sm:$0xf]
    %v888 = vld [vmem:[#allocation10 + $0x5f0] sm:$0xff]
    %v889 = vld [vmem:[#allocation10 + $0x5f8] sm:$0xff]
    %v890 = vld [vmem:[#allocation10 + $0x600] sm:$0xf]
    %v891 = vld [vmem:[#allocation10 + $0x604] sm:$0xff]
    %v892 = vld [vmem:[#allocation10 + $0x60c] sm:$0xff]
    %v893 = vld [vmem:[#allocation10 + $0x614] sm:$0xf]
    %v894 = vld [vmem:[#allocation10 + $0x618] sm:$0xff]
    %v895 = vld [vmem:[#allocation10 + $0x620] sm:$0xff]
    %v896 = vld [vmem:[#allocation10 + $0x628] sm:$0xf]
    %v897 = vld [vmem:[#allocation10 + $0x62c] sm:$0xff]
    %v898 = vld [vmem:[#allocation10 + $0x634] sm:$0xff]
    %v899 = vld [vmem:[#allocation10 + $0x63c] sm:$0xf]
    %v900 = vld [vmem:[#allocation10 + $0x640] sm:$0xff]
    %v901 = vld [vmem:[#allocation10 + $0x648] sm:$0xff]
    %v902 = vld [vmem:[#allocation10 + $0x650] sm:$0xf]
    %v903 = vld [vmem:[#allocation10 + $0x654] sm:$0xff]
    %v904 = vld [vmem:[#allocation10 + $0x65c] sm:$0xff]
    %v905 = vld [vmem:[#allocation10 + $0x664] sm:$0xf]
    %v906 = vld [vmem:[#allocation10 + $0x668] sm:$0xff]
    %v907 = vld [vmem:[#allocation10 + $0x670] sm:$0xff]
    %v908 = vld [vmem:[#allocation10 + $0x678] sm:$0xf]
    %v909 = vld [vmem:[#allocation10 + $0x67c] sm:$0xff]
    %v910 = vld [vmem:[#allocation10 + $0x684] sm:$0xff]
    %v911 = vld [vmem:[#allocation10 + $0x68c] sm:$0xf]
    %v912 = vld [vmem:[#allocation10 + $0x690] sm:$0xff]
    %v913 = vld [vmem:[#allocation10 + $0x698] sm:$0xff]
    %v914 = vld [vmem:[#allocation10 + $0x6a0] sm:$0xf]
    %v915 = vld [vmem:[#allocation10 + $0x6a4] sm:$0xff]
    %v916 = vld [vmem:[#allocation10 + $0x6ac] sm:$0xff]
    %v917 = vld [vmem:[#allocation10 + $0x6b4] sm:$0xf]
    %v918 = vld [vmem:[#allocation10 + $0x6b8] sm:$0xff]
    %v919 = vld [vmem:[#allocation10 + $0x6c0] sm:$0xff]
    %v920 = vld [vmem:[#allocation10 + $0x6c8] sm:$0xf]
    %v921 = vld [vmem:[#allocation10 + $0x6cc] sm:$0xff]
    %v922 = vld [vmem:[#allocation10 + $0x6d4] sm:$0xff]
    %v923 = vld [vmem:[#allocation10 + $0x6dc] sm:$0xf]
    %v924 = vld [vmem:[#allocation10 + $0x6e0] sm:$0xff]
    %v925 = vld [vmem:[#allocation10 + $0x6e8] sm:$0xff]
    %v926 = vld [vmem:[#allocation10 + $0x6f0] sm:$0xf]
    %v927 = vld [vmem:[#allocation10 + $0x6f4] sm:$0xff]
    %v928 = vld [vmem:[#allocation10 + $0x6fc] sm:$0xff]
    %v929 = vld [vmem:[#allocation10 + $0x704] sm:$0xf]
    %v930 = vld [vmem:[#allocation10 + $0x708] sm:$0xff]
    %v931 = vld [vmem:[#allocation10 + $0x710] sm:$0xff]
    %v932 = vld [vmem:[#allocation10 + $0x718] sm:$0xf]
    %v933 = vld [vmem:[#allocation10 + $0x71c] sm:$0xff]
    %v934 = vld [vmem:[#allocation10 + $0x724] sm:$0xff]
    %v935 = vld [vmem:[#allocation10 + $0x72c] sm:$0xf]
    %v936 = vld [vmem:[#allocation10 + $0x730] sm:$0xff]
    %v937 = vld [vmem:[#allocation10 + $0x738] sm:$0xff]
    %v938 = vld [vmem:[#allocation10 + $0x740] sm:$0xf]
    %v939 = vld [vmem:[#allocation10 + $0x744] sm:$0xff]
    %v940 = vld [vmem:[#allocation10 + $0x74c] sm:$0xff]
    %v941 = vld [vmem:[#allocation10 + $0x754] sm:$0xf]
    %v942 = vld [vmem:[#allocation10 + $0x758] sm:$0xff]
    %v943 = vld [vmem:[#allocation10 + $0x760] sm:$0xff]
    %v944 = vld [vmem:[#allocation10 + $0x768] sm:$0xf]
    %v945 = vld [vmem:[#allocation10 + $0x76c] sm:$0xff]
    %v946 = vld [vmem:[#allocation10 + $0x774] sm:$0xff]
    %v947 = vld [vmem:[#allocation10 + $0x77c] sm:$0xf]
    %v948 = vld [vmem:[#allocation10 + $0x780] sm:$0xff]
    %v949 = vld [vmem:[#allocation10 + $0x788] sm:$0xff]
    %v950 = vld [vmem:[#allocation10 + $0x790] sm:$0xf]
    %v951 = vld [vmem:[#allocation10 + $0x794] sm:$0xff]
    %v952 = vld [vmem:[#allocation10 + $0x79c] sm:$0xff]
    %v953 = vld [vmem:[#allocation10 + $0x7a4] sm:$0xf]
    %v954 = vld [vmem:[#allocation10 + $0x7a8] sm:$0xff]
    %v955 = vld [vmem:[#allocation10 + $0x7b0] sm:$0xff]
    %v956 = vld [vmem:[#allocation10 + $0x7b8] sm:$0xf]
    %v957 = vld [vmem:[#allocation10 + $0x7bc] sm:$0xff]
    %v958 = vld [vmem:[#allocation10 + $0x7c4] sm:$0xff]
    %v959 = vld [vmem:[#allocation10 + $0x7cc] sm:$0xf]
    %v960 = vld [vmem:[#allocation10 + $0x7d0] sm:$0xff]
    %v961 = vld [vmem:[#allocation10 + $0x7d8] sm:$0xff]
    %v962 = vld [vmem:[#allocation10 + $0x7e0] sm:$0xf]
    %v963 = vld [vmem:[#allocation10 + $0x7e4] sm:$0xff]
    %v964 = vld [vmem:[#allocation10 + $0x7ec] sm:$0xff]
    %v965 = vld [vmem:[#allocation10 + $0x7f4] sm:$0xf]
    %v966 = vld [vmem:[#allocation10 + $0x7f8] sm:$0xff]
    %v967 = vld [vmem:[#allocation10 + $0x800] sm:$0xff]
    %v968 = vld [vmem:[#allocation10 + $0x808] sm:$0xf]
    %v969 = vld [vmem:[#allocation10 + $0x80c] sm:$0xff]
    %v970 = vld [vmem:[#allocation10 + $0x814] sm:$0xff]
    %v971 = vld [vmem:[#allocation10 + $0x81c] sm:$0xf]
    %v972 = vld [vmem:[#allocation10 + $0x820] sm:$0xff]
    %v973 = vld [vmem:[#allocation10 + $0x828] sm:$0xff]
    %v974 = vld [vmem:[#allocation10 + $0x830] sm:$0xf]
    %v975 = vld [vmem:[#allocation10 + $0x834] sm:$0xff]
    %v976 = vld [vmem:[#allocation10 + $0x83c] sm:$0xff]
    %v977 = vld [vmem:[#allocation10 + $0x844] sm:$0xf]
    %v978 = vld [vmem:[#allocation10 + $0x848] sm:$0xff]
    %v979 = vld [vmem:[#allocation10 + $0x850] sm:$0xff]
    %v980 = vld [vmem:[#allocation10 + $0x858] sm:$0xf]
    %v981 = vld [vmem:[#allocation10 + $0x85c] sm:$0xff]
    %v982 = vld [vmem:[#allocation10 + $0x864] sm:$0xff]
    %v983 = vld [vmem:[#allocation10 + $0x86c] sm:$0xf]
    %v984 = vld [vmem:[#allocation10 + $0x870] sm:$0xff]
    %v985 = vld [vmem:[#allocation10 + $0x878] sm:$0xff]
    %v986 = vld [vmem:[#allocation10 + $0x880] sm:$0xf]
    %v987 = vld [vmem:[#allocation10 + $0x884] sm:$0xff]
    %v988 = vld [vmem:[#allocation10 + $0x88c] sm:$0xff]
    %v989 = vld [vmem:[#allocation10 + $0x894] sm:$0xf]
    %v990 = vld [vmem:[#allocation10 + $0x898] sm:$0xff]
    %v991 = vld [vmem:[#allocation10 + $0x8a0] sm:$0xff]
    %v992 = vld [vmem:[#allocation10 + $0x8a8] sm:$0xf]
    %v993 = vld [vmem:[#allocation10 + $0x8ac] sm:$0xff]
    %v994 = vld [vmem:[#allocation10 + $0x8b4] sm:$0xff]
    %v995 = vld [vmem:[#allocation10 + $0x8bc] sm:$0xf]
    %v996 = vld [vmem:[#allocation12] sm:$0x1f]
    %v998 = vlaneseq
    %v999 = vshrl.u32 %v998, 7
    %v1000 = vsub.s32 0, %v999
    %v1001 = vrot.slane %v996, %v1000
    %v1002 = vlaneseq
    %v1003 = vshrl.u32 %v1002, 7
    %v1004 = vsub.s32 1, %v1003
    %v1005 = vrot.slane %v996, %v1004
    %v1006 = vlaneseq
    %v1007 = vshrl.u32 %v1006, 7
    %v1008 = vsub.s32 2, %v1007
    %v1009 = vrot.slane %v996, %v1008
    %v1010 = vlaneseq
    %v1011 = vshrl.u32 %v1010, 7
    %v1012 = vsub.s32 3, %v1011
    %v1013 = vrot.slane %v996, %v1012
    %v1014 = vlaneseq
    %v1015 = vshrl.u32 %v1014, 7
    %v1016 = vsub.s32 4, %v1015
    %v1017 = vrot.slane %v996, %v1016
    %v1359 = vunpack.c.l.b16 %v660
    %v1360 = vunpack.c.h.b16 %v660
    %v1361 = vunpack.c.l.b16 %v661
    %v1362 = vunpack.c.h.b16 %v661
    %v1363 = vunpack.c.l.b16 %v662
    %v1364 = vunpack.c.l.b16 %v663
    %v1365 = vunpack.c.h.b16 %v663
    %v1366 = vunpack.c.l.b16 %v664
    %v1367 = vunpack.c.h.b16 %v664
    %v1368 = vunpack.c.l.b16 %v665
    %v1369 = vunpack.c.l.b16 %v666
    %v1370 = vunpack.c.h.b16 %v666
    %v1371 = vunpack.c.l.b16 %v667
    %v1372 = vunpack.c.h.b16 %v667
    %v1373 = vunpack.c.l.b16 %v668
    %v1374 = vunpack.c.l.b16 %v669
    %v1375 = vunpack.c.h.b16 %v669
    %v1376 = vunpack.c.l.b16 %v670
    %v1377 = vunpack.c.h.b16 %v670
    %v1378 = vunpack.c.l.b16 %v671
    %v1379 = vunpack.c.l.b16 %v672
    %v1380 = vunpack.c.h.b16 %v672
    %v1381 = vunpack.c.l.b16 %v673
    %v1382 = vunpack.c.h.b16 %v673
    %v1383 = vunpack.c.l.b16 %v674
    %v1384 = vunpack.c.l.b16 %v675
    %v1385 = vunpack.c.h.b16 %v675
    %v1386 = vunpack.c.l.b16 %v676
    %v1387 = vunpack.c.h.b16 %v676
    %v1388 = vunpack.c.l.b16 %v677
    %v1389 = vunpack.c.l.b16 %v678
    %v1390 = vunpack.c.h.b16 %v678
    %v1391 = vunpack.c.l.b16 %v679
    %v1392 = vunpack.c.h.b16 %v679
    %v1393 = vunpack.c.l.b16 %v680
    %v1394 = vunpack.c.l.b16 %v681
    %v1395 = vunpack.c.h.b16 %v681
    %v1396 = vunpack.c.l.b16 %v682
    %v1397 = vunpack.c.h.b16 %v682
    %v1398 = vunpack.c.l.b16 %v683
    %v1399 = vunpack.c.l.b16 %v684
    %v1400 = vunpack.c.h.b16 %v684
    %v1401 = vunpack.c.l.b16 %v685
    %v1402 = vunpack.c.h.b16 %v685
    %v1403 = vunpack.c.l.b16 %v686
    %v1404 = vunpack.c.l.b16 %v687
    %v1405 = vunpack.c.h.b16 %v687
    %v1406 = vunpack.c.l.b16 %v688
    %v1407 = vunpack.c.h.b16 %v688
    %v1408 = vunpack.c.l.b16 %v689
    %v1409 = vunpack.c.l.b16 %v690
    %v1410 = vunpack.c.h.b16 %v690
    %v1411 = vunpack.c.l.b16 %v691
    %v1412 = vunpack.c.h.b16 %v691
    %v1413 = vunpack.c.l.b16 %v692
    %v1414 = vunpack.c.l.b16 %v693
    %v1415 = vunpack.c.h.b16 %v693
    %v1416 = vunpack.c.l.b16 %v694
    %v1417 = vunpack.c.h.b16 %v694
    %v1418 = vunpack.c.l.b16 %v695
    %v1419 = vunpack.c.l.b16 %v696
    %v1420 = vunpack.c.h.b16 %v696
    %v1421 = vunpack.c.l.b16 %v697
    %v1422 = vunpack.c.h.b16 %v697
    %v1423 = vunpack.c.l.b16 %v698
    %v1424 = vunpack.c.l.b16 %v699
    %v1425 = vunpack.c.h.b16 %v699
    %v1426 = vunpack.c.l.b16 %v700
    %v1427 = vunpack.c.h.b16 %v700
    %v1428 = vunpack.c.l.b16 %v701
    %v1429 = vunpack.c.l.b16 %v702
    %v1430 = vunpack.c.h.b16 %v702
    %v1431 = vunpack.c.l.b16 %v703
    %v1432 = vunpack.c.h.b16 %v703
    %v1433 = vunpack.c.l.b16 %v704
    %v1434 = vunpack.c.l.b16 %v705
    %v1435 = vunpack.c.h.b16 %v705
    %v1436 = vunpack.c.l.b16 %v706
    %v1437 = vunpack.c.h.b16 %v706
    %v1438 = vunpack.c.l.b16 %v707
    %v1439 = vunpack.c.l.b16 %v708
    %v1440 = vunpack.c.h.b16 %v708
    %v1441 = vunpack.c.l.b16 %v709
    %v1442 = vunpack.c.h.b16 %v709
    %v1443 = vunpack.c.l.b16 %v710
    %v1444 = vunpack.c.l.b16 %v711
    %v1445 = vunpack.c.h.b16 %v711
    %v1446 = vunpack.c.l.b16 %v712
    %v1447 = vunpack.c.h.b16 %v712
    %v1448 = vunpack.c.l.b16 %v713
    %v1449 = vunpack.c.l.b16 %v714
    %v1450 = vunpack.c.h.b16 %v714
    %v1451 = vunpack.c.l.b16 %v715
    %v1452 = vunpack.c.h.b16 %v715
    %v1453 = vunpack.c.l.b16 %v716
    %v1454 = vunpack.c.l.b16 %v717
    %v1455 = vunpack.c.h.b16 %v717
    %v1456 = vunpack.c.l.b16 %v718
    %v1457 = vunpack.c.h.b16 %v718
    %v1458 = vunpack.c.l.b16 %v719
    %v1459 = vunpack.c.l.b16 %v720
    %v1460 = vunpack.c.h.b16 %v720
    %v1461 = vunpack.c.l.b16 %v721
    %v1462 = vunpack.c.h.b16 %v721
    %v1463 = vunpack.c.l.b16 %v722
    %v1464 = vunpack.c.l.b16 %v723
    %v1465 = vunpack.c.h.b16 %v723
    %v1466 = vunpack.c.l.b16 %v724
    %v1467 = vunpack.c.h.b16 %v724
    %v1468 = vunpack.c.l.b16 %v725
    %v1469 = vunpack.c.l.b16 %v726
    %v1470 = vunpack.c.h.b16 %v726
    %v1471 = vunpack.c.l.b16 %v727
    %v1472 = vunpack.c.h.b16 %v727
    %v1473 = vunpack.c.l.b16 %v728
    %v1474 = vunpack.c.l.b16 %v729
    %v1475 = vunpack.c.h.b16 %v729
    %v1476 = vunpack.c.l.b16 %v730
    %v1477 = vunpack.c.h.b16 %v730
    %v1478 = vunpack.c.l.b16 %v731
    %v1479 = vunpack.c.l.b16 %v732
    %v1480 = vunpack.c.h.b16 %v732
    %v1481 = vunpack.c.l.b16 %v733
    %v1482 = vunpack.c.h.b16 %v733
    %v1483 = vunpack.c.l.b16 %v734
    %v1484 = vunpack.c.l.b16 %v735
    %v1485 = vunpack.c.h.b16 %v735
    %v1486 = vunpack.c.l.b16 %v736
    %v1487 = vunpack.c.h.b16 %v736
    %v1488 = vunpack.c.l.b16 %v737
    %v1489 = vunpack.c.l.b16 %v738
    %v1490 = vunpack.c.h.b16 %v738
    %v1491 = vunpack.c.l.b16 %v739
    %v1492 = vunpack.c.h.b16 %v739
    %v1493 = vunpack.c.l.b16 %v740
    %v1494 = vunpack.c.l.b16 %v741
    %v1495 = vunpack.c.h.b16 %v741
    %v1496 = vunpack.c.l.b16 %v742
    %v1497 = vunpack.c.h.b16 %v742
    %v1498 = vunpack.c.l.b16 %v743
    %v1499 = vunpack.c.l.b16 %v744
    %v1500 = vunpack.c.h.b16 %v744
    %v1501 = vunpack.c.l.b16 %v745
    %v1502 = vunpack.c.h.b16 %v745
    %v1503 = vunpack.c.l.b16 %v746
    %v1504 = vunpack.c.l.b16 %v747
    %v1505 = vunpack.c.h.b16 %v747
    %v1506 = vunpack.c.l.b16 %v748
    %v1507 = vunpack.c.h.b16 %v748
    %v1508 = vunpack.c.l.b16 %v749
    %v1509 = vunpack.c.l.b16 %v750
    %v1510 = vunpack.c.h.b16 %v750
    %v1511 = vunpack.c.l.b16 %v751
    %v1512 = vunpack.c.h.b16 %v751
    %v1513 = vunpack.c.l.b16 %v752
    %v1514 = vunpack.c.l.b16 %v753
    %v1515 = vunpack.c.h.b16 %v753
    %v1516 = vunpack.c.l.b16 %v754
    %v1517 = vunpack.c.h.b16 %v754
    %v1518 = vunpack.c.l.b16 %v755
    %v1519 = vunpack.c.l.b16 %v756
    %v1520 = vunpack.c.h.b16 %v756
    %v1521 = vunpack.c.l.b16 %v757
    %v1522 = vunpack.c.h.b16 %v757
    %v1523 = vunpack.c.l.b16 %v758
    %v1524 = vunpack.c.l.b16 %v759
    %v1525 = vunpack.c.h.b16 %v759
    %v1526 = vunpack.c.l.b16 %v760
    %v1527 = vunpack.c.h.b16 %v760
    %v1528 = vunpack.c.l.b16 %v761
    %v1529 = vunpack.c.l.b16 %v762
    %v1530 = vunpack.c.h.b16 %v762
    %v1531 = vunpack.c.l.b16 %v763
    %v1532 = vunpack.c.h.b16 %v763
    %v1533 = vunpack.c.l.b16 %v764
    %v1534 = vunpack.c.l.b16 %v765
    %v1535 = vunpack.c.h.b16 %v765
    %v1536 = vunpack.c.l.b16 %v766
    %v1537 = vunpack.c.h.b16 %v766
    %v1538 = vunpack.c.l.b16 %v767
    %v1539 = vunpack.c.l.b16 %v768
    %v1540 = vunpack.c.h.b16 %v768
    %v1541 = vunpack.c.l.b16 %v769
    %v1542 = vunpack.c.h.b16 %v769
    %v1543 = vunpack.c.l.b16 %v770
    %v1544 = vunpack.c.l.b16 %v771
    %v1545 = vunpack.c.h.b16 %v771
    %v1546 = vunpack.c.l.b16 %v772
    %v1547 = vunpack.c.h.b16 %v772
    %v1548 = vunpack.c.l.b16 %v773
    %v1549 = vunpack.c.l.b16 %v774
    %v1550 = vunpack.c.h.b16 %v774
    %v1551 = vunpack.c.l.b16 %v775
    %v1552 = vunpack.c.h.b16 %v775
    %v1553 = vunpack.c.l.b16 %v776
    %v1554 = vunpack.c.l.b16 %v777
    %v1555 = vunpack.c.h.b16 %v777
    %v1556 = vunpack.c.l.b16 %v778
    %v1557 = vunpack.c.h.b16 %v778
    %v1558 = vunpack.c.l.b16 %v779
    %v1559 = vunpack.c.l.b16 %v780
    %v1560 = vunpack.c.h.b16 %v780
    %v1561 = vunpack.c.l.b16 %v781
    %v1562 = vunpack.c.h.b16 %v781
    %v1563 = vunpack.c.l.b16 %v782
    %v1564 = vunpack.c.l.b16 %v783
    %v1565 = vunpack.c.h.b16 %v783
    %v1566 = vunpack.c.l.b16 %v784
    %v1567 = vunpack.c.h.b16 %v784
    %v1568 = vunpack.c.l.b16 %v785
    %v1569 = vunpack.c.l.b16 %v786
    %v1570 = vunpack.c.h.b16 %v786
    %v1571 = vunpack.c.l.b16 %v787
    %v1572 = vunpack.c.h.b16 %v787
    %v1573 = vunpack.c.l.b16 %v788
    %v1574 = vunpack.c.l.b16 %v789
    %v1575 = vunpack.c.h.b16 %v789
    %v1576 = vunpack.c.l.b16 %v790
    %v1577 = vunpack.c.h.b16 %v790
    %v1578 = vunpack.c.l.b16 %v791
    %v1579 = vunpack.c.l.b16 %v792
    %v1580 = vunpack.c.h.b16 %v792
    %v1581 = vunpack.c.l.b16 %v793
    %v1582 = vunpack.c.h.b16 %v793
    %v1583 = vunpack.c.l.b16 %v794
    %v1584 = vunpack.c.l.b16 %v795
    %v1585 = vunpack.c.h.b16 %v795
    %v1586 = vunpack.c.l.b16 %v796
    %v1587 = vunpack.c.h.b16 %v796
    %v1588 = vunpack.c.l.b16 %v797
    %v1589 = vunpack.c.l.b16 %v798
    %v1590 = vunpack.c.h.b16 %v798
    %v1591 = vunpack.c.l.b16 %v799
    %v1592 = vunpack.c.h.b16 %v799
    %v1593 = vunpack.c.l.b16 %v800
    %v1594 = vunpack.c.l.b16 %v801
    %v1595 = vunpack.c.h.b16 %v801
    %v1596 = vunpack.c.l.b16 %v802
    %v1597 = vunpack.c.h.b16 %v802
    %v1598 = vunpack.c.l.b16 %v803
    %v1599 = vunpack.c.l.b16 %v804
    %v1600 = vunpack.c.h.b16 %v804
    %v1601 = vunpack.c.l.b16 %v805
    %v1602 = vunpack.c.h.b16 %v805
    %v1603 = vunpack.c.l.b16 %v806
    %v1604 = vunpack.c.l.b16 %v807
    %v1605 = vunpack.c.h.b16 %v807
    %v1606 = vunpack.c.l.b16 %v808
    %v1607 = vunpack.c.h.b16 %v808
    %v1608 = vunpack.c.l.b16 %v809
    %v1609 = vunpack.c.l.b16 %v810
    %v1610 = vunpack.c.h.b16 %v810
    %v1611 = vunpack.c.l.b16 %v811
    %v1612 = vunpack.c.h.b16 %v811
    %v1613 = vunpack.c.l.b16 %v812
    %v1614 = vunpack.c.l.b16 %v813
    %v1615 = vunpack.c.h.b16 %v813
    %v1616 = vunpack.c.l.b16 %v814
    %v1617 = vunpack.c.h.b16 %v814
    %v1618 = vunpack.c.l.b16 %v815
    %v1619 = vunpack.c.l.b16 %v816
    %v1620 = vunpack.c.h.b16 %v816
    %v1621 = vunpack.c.l.b16 %v817
    %v1622 = vunpack.c.h.b16 %v817
    %v1623 = vunpack.c.l.b16 %v818
    %v1624 = vunpack.c.l.b16 %v819
    %v1625 = vunpack.c.h.b16 %v819
    %v1626 = vunpack.c.l.b16 %v820
    %v1627 = vunpack.c.h.b16 %v820
    %v1628 = vunpack.c.l.b16 %v821
    %v1629 = vunpack.c.l.b16 %v822
    %v1630 = vunpack.c.h.b16 %v822
    %v1631 = vunpack.c.l.b16 %v823
    %v1632 = vunpack.c.h.b16 %v823
    %v1633 = vunpack.c.l.b16 %v824
    %v1634 = vunpack.c.l.b16 %v825
    %v1635 = vunpack.c.h.b16 %v825
    %v1636 = vunpack.c.l.b16 %v826
    %v1637 = vunpack.c.h.b16 %v826
    %v1638 = vunpack.c.l.b16 %v827
    %v1639 = vunpack.c.l.b16 %v828
    %v1640 = vunpack.c.h.b16 %v828
    %v1641 = vunpack.c.l.b16 %v829
    %v1642 = vunpack.c.h.b16 %v829
    %v1643 = vunpack.c.l.b16 %v830
    %v1644 = vunpack.c.l.b16 %v831
    %v1645 = vunpack.c.h.b16 %v831
    %v1646 = vunpack.c.l.b16 %v832
    %v1647 = vunpack.c.h.b16 %v832
    %v1648 = vunpack.c.l.b16 %v833
    %v1649 = vunpack.c.l.b16 %v834
    %v1650 = vunpack.c.h.b16 %v834
    %v1651 = vunpack.c.l.b16 %v835
    %v1652 = vunpack.c.h.b16 %v835
    %v1653 = vunpack.c.l.b16 %v836
    %v1654 = vunpack.c.l.b16 %v837
    %v1655 = vunpack.c.h.b16 %v837
    %v1656 = vunpack.c.l.b16 %v838
    %v1657 = vunpack.c.h.b16 %v838
    %v1658 = vunpack.c.l.b16 %v839
    %v1659 = vunpack.c.l.b16 %v840
    %v1660 = vunpack.c.h.b16 %v840
    %v1661 = vunpack.c.l.b16 %v841
    %v1662 = vunpack.c.h.b16 %v841
    %v1663 = vunpack.c.l.b16 %v842
    %v1664 = vunpack.c.l.b16 %v843
    %v1665 = vunpack.c.h.b16 %v843
    %v1666 = vunpack.c.l.b16 %v844
    %v1667 = vunpack.c.h.b16 %v844
    %v1668 = vunpack.c.l.b16 %v845
    %v1669 = vunpack.c.l.b16 %v846
    %v1670 = vunpack.c.h.b16 %v846
    %v1671 = vunpack.c.l.b16 %v847
    %v1672 = vunpack.c.h.b16 %v847
    %v1673 = vunpack.c.l.b16 %v848
    %v1674 = vunpack.c.l.b16 %v849
    %v1675 = vunpack.c.h.b16 %v849
    %v1676 = vunpack.c.l.b16 %v850
    %v1677 = vunpack.c.h.b16 %v850
    %v1678 = vunpack.c.l.b16 %v851
    %v1679 = vunpack.c.l.b16 %v852
    %v1680 = vunpack.c.h.b16 %v852
    %v1681 = vunpack.c.l.b16 %v853
    %v1682 = vunpack.c.h.b16 %v853
    %v1683 = vunpack.c.l.b16 %v854
    %v1684 = vunpack.c.l.b16 %v855
    %v1685 = vunpack.c.h.b16 %v855
    %v1686 = vunpack.c.l.b16 %v856
    %v1687 = vunpack.c.h.b16 %v856
    %v1688 = vunpack.c.l.b16 %v857
    %v1689 = vunpack.c.l.b16 %v858
    %v1690 = vunpack.c.h.b16 %v858
    %v1691 = vunpack.c.l.b16 %v859
    %v1692 = vunpack.c.h.b16 %v859
    %v1693 = vunpack.c.l.b16 %v860
    %v1694 = vunpack.c.l.b16 %v861
    %v1695 = vunpack.c.h.b16 %v861
    %v1696 = vunpack.c.l.b16 %v862
    %v1697 = vunpack.c.h.b16 %v862
    %v1698 = vunpack.c.l.b16 %v863
    %v1699 = vunpack.c.l.b16 %v864
    %v1700 = vunpack.c.h.b16 %v864
    %v1701 = vunpack.c.l.b16 %v865
    %v1702 = vunpack.c.h.b16 %v865
    %v1703 = vunpack.c.l.b16 %v866
    %v1704 = vunpack.c.l.b16 %v867
    %v1705 = vunpack.c.h.b16 %v867
    %v1706 = vunpack.c.l.b16 %v868
    %v1707 = vunpack.c.h.b16 %v868
    %v1708 = vunpack.c.l.b16 %v869
    %v1709 = vunpack.c.l.b16 %v870
    %v1710 = vunpack.c.h.b16 %v870
    %v1711 = vunpack.c.l.b16 %v871
    %v1712 = vunpack.c.h.b16 %v871
    %v1713 = vunpack.c.l.b16 %v872
    %v1714 = vunpack.c.l.b16 %v873
    %v1715 = vunpack.c.h.b16 %v873
    %v1716 = vunpack.c.l.b16 %v874
    %v1717 = vunpack.c.h.b16 %v874
    %v1718 = vunpack.c.l.b16 %v875
    %v1719 = vunpack.c.l.b16 %v876
    %v1720 = vunpack.c.h.b16 %v876
    %v1721 = vunpack.c.l.b16 %v877
    %v1722 = vunpack.c.h.b16 %v877
    %v1723 = vunpack.c.l.b16 %v878
    %v1724 = vunpack.c.l.b16 %v879
    %v1725 = vunpack.c.h.b16 %v879
    %v1726 = vunpack.c.l.b16 %v880
    %v1727 = vunpack.c.h.b16 %v880
    %v1728 = vunpack.c.l.b16 %v881
    %v1729 = vunpack.c.l.b16 %v882
    %v1730 = vunpack.c.h.b16 %v882
    %v1731 = vunpack.c.l.b16 %v883
    %v1732 = vunpack.c.h.b16 %v883
    %v1733 = vunpack.c.l.b16 %v884
    %v1734 = vunpack.c.l.b16 %v885
    %v1735 = vunpack.c.h.b16 %v885
    %v1736 = vunpack.c.l.b16 %v886
    %v1737 = vunpack.c.h.b16 %v886
    %v1738 = vunpack.c.l.b16 %v887
    %v1739 = vunpack.c.l.b16 %v888
    %v1740 = vunpack.c.h.b16 %v888
    %v1741 = vunpack.c.l.b16 %v889
    %v1742 = vunpack.c.h.b16 %v889
    %v1743 = vunpack.c.l.b16 %v890
    %v1744 = vunpack.c.l.b16 %v891
    %v1745 = vunpack.c.h.b16 %v891
    %v1746 = vunpack.c.l.b16 %v892
    %v1747 = vunpack.c.h.b16 %v892
    %v1748 = vunpack.c.l.b16 %v893
    %v1749 = vunpack.c.l.b16 %v894
    %v1750 = vunpack.c.h.b16 %v894
    %v1751 = vunpack.c.l.b16 %v895
    %v1752 = vunpack.c.h.b16 %v895
    %v1753 = vunpack.c.l.b16 %v896
    %v1754 = vunpack.c.l.b16 %v897
    %v1755 = vunpack.c.h.b16 %v897
    %v1756 = vunpack.c.l.b16 %v898
    %v1757 = vunpack.c.h.b16 %v898
    %v1758 = vunpack.c.l.b16 %v899
    %v1759 = vunpack.c.l.b16 %v900
    %v1760 = vunpack.c.h.b16 %v900
    %v1761 = vunpack.c.l.b16 %v901
    %v1762 = vunpack.c.h.b16 %v901
    %v1763 = vunpack.c.l.b16 %v902
    %v1764 = vunpack.c.l.b16 %v903
    %v1765 = vunpack.c.h.b16 %v903
    %v1766 = vunpack.c.l.b16 %v904
    %v1767 = vunpack.c.h.b16 %v904
    %v1768 = vunpack.c.l.b16 %v905
    %v1769 = vunpack.c.l.b16 %v906
    %v1770 = vunpack.c.h.b16 %v906
    %v1771 = vunpack.c.l.b16 %v907
    %v1772 = vunpack.c.h.b16 %v907
    %v1773 = vunpack.c.l.b16 %v908
    %v1774 = vunpack.c.l.b16 %v909
    %v1775 = vunpack.c.h.b16 %v909
    %v1776 = vunpack.c.l.b16 %v910
    %v1777 = vunpack.c.h.b16 %v910
    %v1778 = vunpack.c.l.b16 %v911
    %v1779 = vunpack.c.l.b16 %v912
    %v1780 = vunpack.c.h.b16 %v912
    %v1781 = vunpack.c.l.b16 %v913
    %v1782 = vunpack.c.h.b16 %v913
    %v1783 = vunpack.c.l.b16 %v914
    %v1784 = vunpack.c.l.b16 %v915
    %v1785 = vunpack.c.h.b16 %v915
    %v1786 = vunpack.c.l.b16 %v916
    %v1787 = vunpack.c.h.b16 %v916
    %v1788 = vunpack.c.l.b16 %v917
    %v1789 = vunpack.c.l.b16 %v918
    %v1790 = vunpack.c.h.b16 %v918
    %v1791 = vunpack.c.l.b16 %v919
    %v1792 = vunpack.c.h.b16 %v919
    %v1793 = vunpack.c.l.b16 %v920
    %v1794 = vunpack.c.l.b16 %v921
    %v1795 = vunpack.c.h.b16 %v921
    %v1796 = vunpack.c.l.b16 %v922
    %v1797 = vunpack.c.h.b16 %v922
    %v1798 = vunpack.c.l.b16 %v923
    %v1799 = vunpack.c.l.b16 %v924
    %v1800 = vunpack.c.h.b16 %v924
    %v1801 = vunpack.c.l.b16 %v925
    %v1802 = vunpack.c.h.b16 %v925
    %v1803 = vunpack.c.l.b16 %v926
    %v1804 = vunpack.c.l.b16 %v927
    %v1805 = vunpack.c.h.b16 %v927
    %v1806 = vunpack.c.l.b16 %v928
    %v1807 = vunpack.c.h.b16 %v928
    %v1808 = vunpack.c.l.b16 %v929
    %v1809 = vunpack.c.l.b16 %v930
    %v1810 = vunpack.c.h.b16 %v930
    %v1811 = vunpack.c.l.b16 %v931
    %v1812 = vunpack.c.h.b16 %v931
    %v1813 = vunpack.c.l.b16 %v932
    %v1814 = vunpack.c.l.b16 %v933
    %v1815 = vunpack.c.h.b16 %v933
    %v1816 = vunpack.c.l.b16 %v934
    %v1817 = vunpack.c.h.b16 %v934
    %v1818 = vunpack.c.l.b16 %v935
    %v1819 = vunpack.c.l.b16 %v936
    %v1820 = vunpack.c.h.b16 %v936
    %v1821 = vunpack.c.l.b16 %v937
    %v1822 = vunpack.c.h.b16 %v937
    %v1823 = vunpack.c.l.b16 %v938
    %v1824 = vunpack.c.l.b16 %v939
    %v1825 = vunpack.c.h.b16 %v939
    %v1826 = vunpack.c.l.b16 %v940
    %v1827 = vunpack.c.h.b16 %v940
    %v1828 = vunpack.c.l.b16 %v941
    %v1829 = vunpack.c.l.b16 %v942
    %v1830 = vunpack.c.h.b16 %v942
    %v1831 = vunpack.c.l.b16 %v943
    %v1832 = vunpack.c.h.b16 %v943
    %v1833 = vunpack.c.l.b16 %v944
    %v1834 = vunpack.c.l.b16 %v945
    %v1835 = vunpack.c.h.b16 %v945
    %v1836 = vunpack.c.l.b16 %v946
    %v1837 = vunpack.c.h.b16 %v946
    %v1838 = vunpack.c.l.b16 %v947
    %v1839 = vunpack.c.l.b16 %v948
    %v1840 = vunpack.c.h.b16 %v948
    %v1841 = vunpack.c.l.b16 %v949
    %v1842 = vunpack.c.h.b16 %v949
    %v1843 = vunpack.c.l.b16 %v950
    %v1844 = vunpack.c.l.b16 %v951
    %v1845 = vunpack.c.h.b16 %v951
    %v1846 = vunpack.c.l.b16 %v952
    %v1847 = vunpack.c.h.b16 %v952
    %v1848 = vunpack.c.l.b16 %v953
    %v1849 = vunpack.c.l.b16 %v954
    %v1850 = vunpack.c.h.b16 %v954
    %v1851 = vunpack.c.l.b16 %v955
    %v1852 = vunpack.c.h.b16 %v955
    %v1853 = vunpack.c.l.b16 %v956
    %v1854 = vunpack.c.l.b16 %v957
    %v1855 = vunpack.c.h.b16 %v957
    %v1856 = vunpack.c.l.b16 %v958
    %v1857 = vunpack.c.h.b16 %v958
    %v1858 = vunpack.c.l.b16 %v959
    %v1859 = vunpack.c.l.b16 %v960
    %v1860 = vunpack.c.h.b16 %v960
    %v1861 = vunpack.c.l.b16 %v961
    %v1862 = vunpack.c.h.b16 %v961
    %v1863 = vunpack.c.l.b16 %v962
    %v1864 = vunpack.c.l.b16 %v963
    %v1865 = vunpack.c.h.b16 %v963
    %v1866 = vunpack.c.l.b16 %v964
    %v1867 = vunpack.c.h.b16 %v964
    %v1868 = vunpack.c.l.b16 %v965
    %v1869 = vunpack.c.l.b16 %v966
    %v1870 = vunpack.c.h.b16 %v966
    %v1871 = vunpack.c.l.b16 %v967
    %v1872 = vunpack.c.h.b16 %v967
    %v1873 = vunpack.c.l.b16 %v968
    %v1874 = vunpack.c.l.b16 %v969
    %v1875 = vunpack.c.h.b16 %v969
    %v1876 = vunpack.c.l.b16 %v970
    %v1877 = vunpack.c.h.b16 %v970
    %v1878 = vunpack.c.l.b16 %v971
    %v1879 = vunpack.c.l.b16 %v972
    %v1880 = vunpack.c.h.b16 %v972
    %v1881 = vunpack.c.l.b16 %v973
    %v1882 = vunpack.c.h.b16 %v973
    %v1883 = vunpack.c.l.b16 %v974
    %v1884 = vunpack.c.l.b16 %v975
    %v1885 = vunpack.c.h.b16 %v975
    %v1886 = vunpack.c.l.b16 %v976
    %v1887 = vunpack.c.h.b16 %v976
    %v1888 = vunpack.c.l.b16 %v977
    %v1889 = vunpack.c.l.b16 %v978
    %v1890 = vunpack.c.h.b16 %v978
    %v1891 = vunpack.c.l.b16 %v979
    %v1892 = vunpack.c.h.b16 %v979
    %v1893 = vunpack.c.l.b16 %v980
    %v1894 = vunpack.c.l.b16 %v981
    %v1895 = vunpack.c.h.b16 %v981
    %v1896 = vunpack.c.l.b16 %v982
    %v1897 = vunpack.c.h.b16 %v982
    %v1898 = vunpack.c.l.b16 %v983
    %v1899 = vunpack.c.l.b16 %v984
    %v1900 = vunpack.c.h.b16 %v984
    %v1901 = vunpack.c.l.b16 %v985
    %v1902 = vunpack.c.h.b16 %v985
    %v1903 = vunpack.c.l.b16 %v986
    %v1904 = vunpack.c.l.b16 %v987
    %v1905 = vunpack.c.h.b16 %v987
    %v1906 = vunpack.c.l.b16 %v988
    %v1907 = vunpack.c.h.b16 %v988
    %v1908 = vunpack.c.l.b16 %v989
    %v1909 = vunpack.c.l.b16 %v990
    %v1910 = vunpack.c.h.b16 %v990
    %v1911 = vunpack.c.l.b16 %v991
    %v1912 = vunpack.c.h.b16 %v991
    %v1913 = vunpack.c.l.b16 %v992
    %v1914 = vunpack.c.l.b16 %v993
    %v1915 = vunpack.c.h.b16 %v993
    %v1916 = vunpack.c.l.b16 %v994
    %v1917 = vunpack.c.h.b16 %v994
    %v1918 = vunpack.c.l.b16 %v995
    %v1919 = vpack.c.b16 %v1364, %v1359
    %v1920 = vpack.c.b16 %v1365, %v1360
    %v1921 = vpack.c.b16 %v1366, %v1361
    %v1922 = vpack.c.b16 %v1367, %v1362
    %v1923 = vpack.c.b16 %v1368, %v1363
    %v1924 = vpack.c.b16 %v1374, %v1369
    %v1925 = vpack.c.b16 %v1375, %v1370
    %v1926 = vpack.c.b16 %v1376, %v1371
    %v1927 = vpack.c.b16 %v1377, %v1372
    %v1928 = vpack.c.b16 %v1378, %v1373
    %v1929 = vpack.c.b16 %v1384, %v1379
    %v1930 = vpack.c.b16 %v1385, %v1380
    %v1931 = vpack.c.b16 %v1386, %v1381
    %v1932 = vpack.c.b16 %v1387, %v1382
    %v1933 = vpack.c.b16 %v1388, %v1383
    %v1934 = vpack.c.b16 %v1394, %v1389
    %v1935 = vpack.c.b16 %v1395, %v1390
    %v1936 = vpack.c.b16 %v1396, %v1391
    %v1937 = vpack.c.b16 %v1397, %v1392
    %v1938 = vpack.c.b16 %v1398, %v1393
    %v1939 = vpack.c.b16 %v1404, %v1399
    %v1940 = vpack.c.b16 %v1405, %v1400
    %v1941 = vpack.c.b16 %v1406, %v1401
    %v1942 = vpack.c.b16 %v1407, %v1402
    %v1943 = vpack.c.b16 %v1408, %v1403
    %v1944 = vpack.c.b16 %v1414, %v1409
    %v1945 = vpack.c.b16 %v1415, %v1410
    %v1946 = vpack.c.b16 %v1416, %v1411
    %v1947 = vpack.c.b16 %v1417, %v1412
    %v1948 = vpack.c.b16 %v1418, %v1413
    %v1949 = vpack.c.b16 %v1424, %v1419
    %v1950 = vpack.c.b16 %v1425, %v1420
    %v1951 = vpack.c.b16 %v1426, %v1421
    %v1952 = vpack.c.b16 %v1427, %v1422
    %v1953 = vpack.c.b16 %v1428, %v1423
    %v1954 = vpack.c.b16 %v1434, %v1429
    %v1955 = vpack.c.b16 %v1435, %v1430
    %v1956 = vpack.c.b16 %v1436, %v1431
    %v1957 = vpack.c.b16 %v1437, %v1432
    %v1958 = vpack.c.b16 %v1438, %v1433
    %v1959 = vpack.c.b16 %v1444, %v1439
    %v1960 = vpack.c.b16 %v1445, %v1440
    %v1961 = vpack.c.b16 %v1446, %v1441
    %v1962 = vpack.c.b16 %v1447, %v1442
    %v1963 = vpack.c.b16 %v1448, %v1443
    %v1964 = vpack.c.b16 %v1454, %v1449
    %v1965 = vpack.c.b16 %v1455, %v1450
    %v1966 = vpack.c.b16 %v1456, %v1451
    %v1967 = vpack.c.b16 %v1457, %v1452
    %v1968 = vpack.c.b16 %v1458, %v1453
    %v1969 = vpack.c.b16 %v1464, %v1459
    %v1970 = vpack.c.b16 %v1465, %v1460
    %v1971 = vpack.c.b16 %v1466, %v1461
    %v1972 = vpack.c.b16 %v1467, %v1462
    %v1973 = vpack.c.b16 %v1468, %v1463
    %v1974 = vpack.c.b16 %v1474, %v1469
    %v1975 = vpack.c.b16 %v1475, %v1470
    %v1976 = vpack.c.b16 %v1476, %v1471
    %v1977 = vpack.c.b16 %v1477, %v1472
    %v1978 = vpack.c.b16 %v1478, %v1473
    %v1979 = vpack.c.b16 %v1484, %v1479
    %v1980 = vpack.c.b16 %v1485, %v1480
    %v1981 = vpack.c.b16 %v1486, %v1481
    %v1982 = vpack.c.b16 %v1487, %v1482
    %v1983 = vpack.c.b16 %v1488, %v1483
    %v1984 = vpack.c.b16 %v1494, %v1489
    %v1985 = vpack.c.b16 %v1495, %v1490
    %v1986 = vpack.c.b16 %v1496, %v1491
    %v1987 = vpack.c.b16 %v1497, %v1492
    %v1988 = vpack.c.b16 %v1498, %v1493
    %v1989 = vpack.c.b16 %v1504, %v1499
    %v1990 = vpack.c.b16 %v1505, %v1500
    %v1991 = vpack.c.b16 %v1506, %v1501
    %v1992 = vpack.c.b16 %v1507, %v1502
    %v1993 = vpack.c.b16 %v1508, %v1503
    %v1994 = vpack.c.b16 %v1514, %v1509
    %v1995 = vpack.c.b16 %v1515, %v1510
    %v1996 = vpack.c.b16 %v1516, %v1511
    %v1997 = vpack.c.b16 %v1517, %v1512
    %v1998 = vpack.c.b16 %v1518, %v1513
    %v1999 = vpack.c.b16 %v1524, %v1519
    %v2000 = vpack.c.b16 %v1525, %v1520
    %v2001 = vpack.c.b16 %v1526, %v1521
    %v2002 = vpack.c.b16 %v1527, %v1522
    %v2003 = vpack.c.b16 %v1528, %v1523
    %v2004 = vpack.c.b16 %v1534, %v1529
    %v2005 = vpack.c.b16 %v1535, %v1530
    %v2006 = vpack.c.b16 %v1536, %v1531
    %v2007 = vpack.c.b16 %v1537, %v1532
    %v2008 = vpack.c.b16 %v1538, %v1533
    %v2009 = vpack.c.b16 %v1544, %v1539
    %v2010 = vpack.c.b16 %v1545, %v1540
    %v2011 = vpack.c.b16 %v1546, %v1541
    %v2012 = vpack.c.b16 %v1547, %v1542
    %v2013 = vpack.c.b16 %v1548, %v1543
    %v2014 = vpack.c.b16 %v1554, %v1549
    %v2015 = vpack.c.b16 %v1555, %v1550
    %v2016 = vpack.c.b16 %v1556, %v1551
    %v2017 = vpack.c.b16 %v1557, %v1552
    %v2018 = vpack.c.b16 %v1558, %v1553
    %v2019 = vpack.c.b16 %v1564, %v1559
    %v2020 = vpack.c.b16 %v1565, %v1560
    %v2021 = vpack.c.b16 %v1566, %v1561
    %v2022 = vpack.c.b16 %v1567, %v1562
    %v2023 = vpack.c.b16 %v1568, %v1563
    %v2024 = vpack.c.b16 %v1574, %v1569
    %v2025 = vpack.c.b16 %v1575, %v1570
    %v2026 = vpack.c.b16 %v1576, %v1571
    %v2027 = vpack.c.b16 %v1577, %v1572
    %v2028 = vpack.c.b16 %v1578, %v1573
    %v2029 = vpack.c.b16 %v1584, %v1579
    %v2030 = vpack.c.b16 %v1585, %v1580
    %v2031 = vpack.c.b16 %v1586, %v1581
    %v2032 = vpack.c.b16 %v1587, %v1582
    %v2033 = vpack.c.b16 %v1588, %v1583
    %v2034 = vpack.c.b16 %v1594, %v1589
    %v2035 = vpack.c.b16 %v1595, %v1590
    %v2036 = vpack.c.b16 %v1596, %v1591
    %v2037 = vpack.c.b16 %v1597, %v1592
    %v2038 = vpack.c.b16 %v1598, %v1593
    %v2039 = vpack.c.b16 %v1604, %v1599
    %v2040 = vpack.c.b16 %v1605, %v1600
    %v2041 = vpack.c.b16 %v1606, %v1601
    %v2042 = vpack.c.b16 %v1607, %v1602
    %v2043 = vpack.c.b16 %v1608, %v1603
    %v2044 = vpack.c.b16 %v1614, %v1609
    %v2045 = vpack.c.b16 %v1615, %v1610
    %v2046 = vpack.c.b16 %v1616, %v1611
    %v2047 = vpack.c.b16 %v1617, %v1612
    %v2048 = vpack.c.b16 %v1618, %v1613
    %v2049 = vpack.c.b16 %v1624, %v1619
    %v2050 = vpack.c.b16 %v1625, %v1620
    %v2051 = vpack.c.b16 %v1626, %v1621
    %v2052 = vpack.c.b16 %v1627, %v1622
    %v2053 = vpack.c.b16 %v1628, %v1623
    %v2054 = vpack.c.b16 %v1634, %v1629
    %v2055 = vpack.c.b16 %v1635, %v1630
    %v2056 = vpack.c.b16 %v1636, %v1631
    %v2057 = vpack.c.b16 %v1637, %v1632
    %v2058 = vpack.c.b16 %v1638, %v1633
    %v2059 = vpack.c.b16 %v1644, %v1639
    %v2060 = vpack.c.b16 %v1645, %v1640
    %v2061 = vpack.c.b16 %v1646, %v1641
    %v2062 = vpack.c.b16 %v1647, %v1642
    %v2063 = vpack.c.b16 %v1648, %v1643
    %v2064 = vpack.c.b16 %v1654, %v1649
    %v2065 = vpack.c.b16 %v1655, %v1650
    %v2066 = vpack.c.b16 %v1656, %v1651
    %v2067 = vpack.c.b16 %v1657, %v1652
    %v2068 = vpack.c.b16 %v1658, %v1653
    %v2069 = vpack.c.b16 %v1664, %v1659
    %v2070 = vpack.c.b16 %v1665, %v1660
    %v2071 = vpack.c.b16 %v1666, %v1661
    %v2072 = vpack.c.b16 %v1667, %v1662
    %v2073 = vpack.c.b16 %v1668, %v1663
    %v2074 = vpack.c.b16 %v1674, %v1669
    %v2075 = vpack.c.b16 %v1675, %v1670
    %v2076 = vpack.c.b16 %v1676, %v1671
    %v2077 = vpack.c.b16 %v1677, %v1672
    %v2078 = vpack.c.b16 %v1678, %v1673
    %v2079 = vpack.c.b16 %v1684, %v1679
    %v2080 = vpack.c.b16 %v1685, %v1680
    %v2081 = vpack.c.b16 %v1686, %v1681
    %v2082 = vpack.c.b16 %v1687, %v1682
    %v2083 = vpack.c.b16 %v1688, %v1683
    %v2084 = vpack.c.b16 %v1694, %v1689
    %v2085 = vpack.c.b16 %v1695, %v1690
    %v2086 = vpack.c.b16 %v1696, %v1691
    %v2087 = vpack.c.b16 %v1697, %v1692
    %v2088 = vpack.c.b16 %v1698, %v1693
    %v2089 = vpack.c.b16 %v1704, %v1699
    %v2090 = vpack.c.b16 %v1705, %v1700
    %v2091 = vpack.c.b16 %v1706, %v1701
    %v2092 = vpack.c.b16 %v1707, %v1702
    %v2093 = vpack.c.b16 %v1708, %v1703
    %v2094 = vpack.c.b16 %v1714, %v1709
    %v2095 = vpack.c.b16 %v1715, %v1710
    %v2096 = vpack.c.b16 %v1716, %v1711
    %v2097 = vpack.c.b16 %v1717, %v1712
    %v2098 = vpack.c.b16 %v1718, %v1713
    %v2099 = vpack.c.b16 %v1724, %v1719
    %v2100 = vpack.c.b16 %v1725, %v1720
    %v2101 = vpack.c.b16 %v1726, %v1721
    %v2102 = vpack.c.b16 %v1727, %v1722
    %v2103 = vpack.c.b16 %v1728, %v1723
    %v2104 = vpack.c.b16 %v1734, %v1729
    %v2105 = vpack.c.b16 %v1735, %v1730
    %v2106 = vpack.c.b16 %v1736, %v1731
    %v2107 = vpack.c.b16 %v1737, %v1732
    %v2108 = vpack.c.b16 %v1738, %v1733
    %v2109 = vpack.c.b16 %v1744, %v1739
    %v2110 = vpack.c.b16 %v1745, %v1740
    %v2111 = vpack.c.b16 %v1746, %v1741
    %v2112 = vpack.c.b16 %v1747, %v1742
    %v2113 = vpack.c.b16 %v1748, %v1743
    %v2114 = vpack.c.b16 %v1754, %v1749
    %v2115 = vpack.c.b16 %v1755, %v1750
    %v2116 = vpack.c.b16 %v1756, %v1751
    %v2117 = vpack.c.b16 %v1757, %v1752
    %v2118 = vpack.c.b16 %v1758, %v1753
    %v2119 = vpack.c.b16 %v1764, %v1759
    %v2120 = vpack.c.b16 %v1765, %v1760
    %v2121 = vpack.c.b16 %v1766, %v1761
    %v2122 = vpack.c.b16 %v1767, %v1762
    %v2123 = vpack.c.b16 %v1768, %v1763
    %v2124 = vpack.c.b16 %v1774, %v1769
    %v2125 = vpack.c.b16 %v1775, %v1770
    %v2126 = vpack.c.b16 %v1776, %v1771
    %v2127 = vpack.c.b16 %v1777, %v1772
    %v2128 = vpack.c.b16 %v1778, %v1773
    %v2129 = vpack.c.b16 %v1784, %v1779
    %v2130 = vpack.c.b16 %v1785, %v1780
    %v2131 = vpack.c.b16 %v1786, %v1781
    %v2132 = vpack.c.b16 %v1787, %v1782
    %v2133 = vpack.c.b16 %v1788, %v1783
    %v2134 = vpack.c.b16 %v1794, %v1789
    %v2135 = vpack.c.b16 %v1795, %v1790
    %v2136 = vpack.c.b16 %v1796, %v1791
    %v2137 = vpack.c.b16 %v1797, %v1792
    %v2138 = vpack.c.b16 %v1798, %v1793
    %v2139 = vpack.c.b16 %v1804, %v1799
    %v2140 = vpack.c.b16 %v1805, %v1800
    %v2141 = vpack.c.b16 %v1806, %v1801
    %v2142 = vpack.c.b16 %v1807, %v1802
    %v2143 = vpack.c.b16 %v1808, %v1803
    %v2144 = vpack.c.b16 %v1814, %v1809
    %v2145 = vpack.c.b16 %v1815, %v1810
    %v2146 = vpack.c.b16 %v1816, %v1811
    %v2147 = vpack.c.b16 %v1817, %v1812
    %v2148 = vpack.c.b16 %v1818, %v1813
    %v2149 = vpack.c.b16 %v1824, %v1819
    %v2150 = vpack.c.b16 %v1825, %v1820
    %v2151 = vpack.c.b16 %v1826, %v1821
    %v2152 = vpack.c.b16 %v1827, %v1822
    %v2153 = vpack.c.b16 %v1828, %v1823
    %v2154 = vpack.c.b16 %v1834, %v1829
    %v2155 = vpack.c.b16 %v1835, %v1830
    %v2156 = vpack.c.b16 %v1836, %v1831
    %v2157 = vpack.c.b16 %v1837, %v1832
    %v2158 = vpack.c.b16 %v1838, %v1833
    %v2159 = vpack.c.b16 %v1844, %v1839
    %v2160 = vpack.c.b16 %v1845, %v1840
    %v2161 = vpack.c.b16 %v1846, %v1841
    %v2162 = vpack.c.b16 %v1847, %v1842
    %v2163 = vpack.c.b16 %v1848, %v1843
    %v2164 = vpack.c.b16 %v1854, %v1849
    %v2165 = vpack.c.b16 %v1855, %v1850
    %v2166 = vpack.c.b16 %v1856, %v1851
    %v2167 = vpack.c.b16 %v1857, %v1852
    %v2168 = vpack.c.b16 %v1858, %v1853
    %v2169 = vpack.c.b16 %v1864, %v1859
    %v2170 = vpack.c.b16 %v1865, %v1860
    %v2171 = vpack.c.b16 %v1866, %v1861
    %v2172 = vpack.c.b16 %v1867, %v1862
    %v2173 = vpack.c.b16 %v1868, %v1863
    %v2174 = vpack.c.b16 %v1874, %v1869
    %v2175 = vpack.c.b16 %v1875, %v1870
    %v2176 = vpack.c.b16 %v1876, %v1871
    %v2177 = vpack.c.b16 %v1877, %v1872
    %v2178 = vpack.c.b16 %v1878, %v1873
    %v2179 = vpack.c.b16 %v1884, %v1879
    %v2180 = vpack.c.b16 %v1885, %v1880
    %v2181 = vpack.c.b16 %v1886, %v1881
    %v2182 = vpack.c.b16 %v1887, %v1882
    %v2183 = vpack.c.b16 %v1888, %v1883
    %v2184 = vpack.c.b16 %v1894, %v1889
    %v2185 = vpack.c.b16 %v1895, %v1890
    %v2186 = vpack.c.b16 %v1896, %v1891
    %v2187 = vpack.c.b16 %v1897, %v1892
    %v2188 = vpack.c.b16 %v1898, %v1893
    %v2189 = vpack.c.b16 %v1904, %v1899
    %v2190 = vpack.c.b16 %v1905, %v1900
    %v2191 = vpack.c.b16 %v1906, %v1901
    %v2192 = vpack.c.b16 %v1907, %v1902
    %v2193 = vpack.c.b16 %v1908, %v1903
    %v2194 = vpack.c.b16 %v1914, %v1909
    %v2195 = vpack.c.b16 %v1915, %v1910
    %v2196 = vpack.c.b16 %v1916, %v1911
    %v2197 = vpack.c.b16 %v1917, %v1912
    %v2198 = vpack.c.b16 %v1918, %v1913
    %2479 = vmatprep.subr.bf16.mxu0 %v1920
    %2480 = vmatpush1.bf16.msra.mxu0 %v1919
    %2481 = vmatprep.subr.bf16.mxu0 %v1925
    %2482 = vmatpush1.bf16.msra.mxu0 %v1924
    %2483 = vmatprep.subr.bf16.mxu0 %v1930
    %2484 = vmatpush1.bf16.msra.mxu0 %v1929
    %2485 = vmatprep.subr.bf16.mxu0 %v1935
    %2486 = vmatpush1.bf16.msra.mxu0 %v1934
    %2487 = vmatprep.subr.bf16.mxu0 %v1940
    %2488 = vmatpush1.bf16.msra.mxu0 %v1939
    %2489 = vmatprep.subr.bf16.mxu0 %v1945
    %2490 = vmatpush1.bf16.msra.mxu0 %v1944
    %2491 = vmatprep.subr.bf16.mxu0 %v1950
    %2492 = vmatpush1.bf16.msra.mxu0 %v1949
    %2493 = vmatprep.subr.bf16.mxu0 %v1955
    %2494 = vmatpush1.bf16.msra.mxu0 %v1954
    %2495 = vmatprep.subr.bf16.mxu0 %v1960
    %2496 = vmatpush1.bf16.msra.mxu0 %v1959
    %2497 = vmatprep.subr.bf16.mxu0 %v1965
    %2498 = vmatpush1.bf16.msra.mxu0 %v1964
    %2499 = vmatprep.subr.bf16.mxu0 %v1970
    %2500 = vmatpush1.bf16.msra.mxu0 %v1969
    %2501 = vmatprep.subr.bf16.mxu0 %v1975
    %2502 = vmatpush1.bf16.msra.mxu0 %v1974
    %2503 = vmatprep.subr.bf16.mxu0 %v1980
    %2504 = vmatpush1.bf16.msra.mxu0 %v1979
    %2505 = vmatprep.subr.bf16.mxu0 %v1985
    %2506 = vmatpush1.bf16.msra.mxu0 %v1984
    %2507 = vmatprep.subr.bf16.mxu0 %v1990
    %2508 = vmatpush1.bf16.msra.mxu0 %v1989
    %2509 = vmatprep.subr.bf16.mxu0 %v1995
    %2510 = vmatpush1.bf16.msra.mxu0 %v1994
    %2511 = vmatprep.mubr.bf16.mxu0 %v654
    %2512 = vmatmul.mubr.bf16.gmra.mrb[0].mxu0 %v653
    %v2513 = vpop.f32.mrb[0].mxu0
    %v2514 = vadd.f32 %v1001, %v2513
    %v2515 = vpop.f32.mrb[0].mxu0
    %v2516 = vadd.f32 %v1005, %v2515
    %v2517 = vpop.f32.mrb[0].mxu0
    %v2518 = vpop.f32.mrb[0].mxu0
    %2519 = vdwg.mxu0
    %2520 = vmatprep.subr.bf16.mxu0 %v2000
    %2521 = vmatpush1.bf16.msra.mxu0 %v1999
    %2522 = vmatprep.subr.bf16.mxu0 %v2005
    %2523 = vmatpush1.bf16.msra.mxu0 %v2004
    %2524 = vmatprep.subr.bf16.mxu0 %v2010
    %2525 = vmatpush1.bf16.msra.mxu0 %v2009
    %2526 = vmatprep.subr.bf16.mxu0 %v2015
    %2527 = vmatpush1.bf16.msra.mxu0 %v2014
    %2528 = vmatprep.subr.bf16.mxu0 %v2020
    %2529 = vmatpush1.bf16.msra.mxu0 %v2019
    %2530 = vmatprep.subr.bf16.mxu0 %v2025
    %2531 = vmatpush1.bf16.msra.mxu0 %v2024
    %2532 = vmatprep.subr.bf16.mxu0 %v2030
    %2533 = vmatpush1.bf16.msra.mxu0 %v2029
    %2534 = vmatprep.subr.bf16.mxu0 %v2035
    %2535 = vmatpush1.bf16.msra.mxu0 %v2034
    %2536 = vmatprep.subr.bf16.mxu0 %v2040
    %2537 = vmatpush1.bf16.msra.mxu0 %v2039
    %2538 = vmatprep.subr.bf16.mxu0 %v2045
    %2539 = vmatpush1.bf16.msra.mxu0 %v2044
    %2540 = vmatprep.subr.bf16.mxu0 %v2050
    %2541 = vmatpush1.bf16.msra.mxu0 %v2049
    %2542 = vmatprep.subr.bf16.mxu0 %v2055
    %2543 = vmatpush1.bf16.msra.mxu0 %v2054
    %2544 = vmatprep.subr.bf16.mxu0 %v2060
    %2545 = vmatpush1.bf16.msra.mxu0 %v2059
    %2546 = vmatprep.subr.bf16.mxu0 %v2065
    %2547 = vmatpush1.bf16.msra.mxu0 %v2064
    %2548 = vmatprep.subr.bf16.mxu0 %v2070
    %2549 = vmatpush1.bf16.msra.mxu0 %v2069
    %2550 = vmatprep.subr.bf16.mxu0 %v2075
    %2551 = vmatpush1.bf16.msra.mxu0 %v2074
    %2552 = vmatprep.mubr.bf16.mxu0 %v656
    %2553 = vmatmul.mubr.bf16.gmra.mrb[0].mxu0 %v655
    %v2554 = vpop.f32.mrb[0].mxu0
    %v2555 = vadd.f32 %v2514, %v2554
    %v2556 = vpop.f32.mrb[0].mxu0
    %v2557 = vadd.f32 %v2516, %v2556
    %v2558 = vpop.f32.mrb[0].mxu0
    %v2559 = vpop.f32.mrb[0].mxu0
    %2560 = vdwg.mxu0
    %2561 = vmatprep.subr.bf16.mxu0 %v2080
    %2562 = vmatpush1.bf16.msra.mxu0 %v2079
    %2563 = vmatprep.subr.bf16.mxu0 %v2085
    %2564 = vmatpush1.bf16.msra.mxu0 %v2084
    %2565 = vmatprep.subr.bf16.mxu0 %v2090
    %2566 = vmatpush1.bf16.msra.mxu0 %v2089
    %2567 = vmatprep.subr.bf16.mxu0 %v2095
    %2568 = vmatpush1.bf16.msra.mxu0 %v2094
    %2569 = vmatprep.subr.bf16.mxu0 %v2100
    %2570 = vmatpush1.bf16.msra.mxu0 %v2099
    %2571 = vmatprep.subr.bf16.mxu0 %v2105
    %2572 = vmatpush1.bf16.msra.mxu0 %v2104
    %2573 = vmatprep.subr.bf16.mxu0 %v2110
    %2574 = vmatpush1.bf16.msra.mxu0 %v2109
    %2575 = vmatprep.subr.bf16.mxu0 %v2115
    %2576 = vmatpush1.bf16.msra.mxu0 %v2114
    %2577 = vmatprep.subr.bf16.mxu0 %v2120
    %2578 = vmatpush1.bf16.msra.mxu0 %v2119
    %2579 = vmatprep.subr.bf16.mxu0 %v2125
    %2580 = vmatpush1.bf16.msra.mxu0 %v2124
    %2581 = vmatprep.subr.bf16.mxu0 %v2130
    %2582 = vmatpush1.bf16.msra.mxu0 %v2129
    %2583 = vmatprep.subr.bf16.mxu0 %v2135
    %2584 = vmatpush1.bf16.msra.mxu0 %v2134
    %2585 = vmatprep.subr.bf16.mxu0 %v2140
    %2586 = vmatpush1.bf16.msra.mxu0 %v2139
    %2587 = vmatprep.subr.bf16.mxu0 %v2145
    %2588 = vmatpush1.bf16.msra.mxu0 %v2144
    %2589 = vmatprep.subr.bf16.mxu0 %v2150
    %2590 = vmatpush1.bf16.msra.mxu0 %v2149
    %2591 = vmatprep.subr.bf16.mxu0 %v2155
    %2592 = vmatpush1.bf16.msra.mxu0 %v2154
    %2593 = vmatprep.mubr.bf16.mxu0 %v658
    %2594 = vmatmul.mubr.bf16.gmra.mrb[0].mxu0 %v657
    %v2595 = vpop.f32.mrb[0].mxu0
    %v2596 = vadd.f32 %v2555, %v2595
    %v2597 = vpop.f32.mrb[0].mxu0
    %v2598 = vadd.f32 %v2557, %v2597
    %v2599 = vpop.f32.mrb[0].mxu0
    %v2600 = vpop.f32.mrb[0].mxu0
    %2601 = vdwg.mxu0
    %2602 = vmatprep.subr.bf16.mxu0 %v2160
    %2603 = vmatpush1.bf16.msra.mxu0 %v2159
    %2604 = vmatprep.subr.bf16.mxu0 %v2165
    %2605 = vmatpush1.bf16.msra.mxu0 %v2164
    %2606 = vmatprep.subr.bf16.mxu0 %v2170
    %2607 = vmatpush1.bf16.msra.mxu0 %v2169
    %2608 = vmatprep.subr.bf16.mxu0 %v2175
    %2609 = vmatpush1.bf16.msra.mxu0 %v2174
    %2610 = vmatprep.subr.bf16.mxu0 %v2180
    %2611 = vmatpush1.bf16.msra.mxu0 %v2179
    %2612 = vmatprep.subr.bf16.mxu0 %v2185
    %2613 = vmatpush1.bf16.msra.mxu0 %v2184
    %2614 = vmatprep.subr.bf16.mxu0 %v2190
    %2615 = vmatpush1.bf16.msra.mxu0 %v2189
    %2616 = vmatprep.subr.bf16.mxu0 %v2195
    %2617 = vmatpush1.bf16.msra.mxu0 %v2194
    %2618 = vmatprep.subr.bf16.mxu0 0
    %2619 = vmatpush1.bf16.msra.mxu0 0
    %2620 = vmatprep.subr.bf16.mxu0 0
    %2621 = vmatpush1.bf16.msra.mxu0 0
    %2622 = vmatprep.subr.bf16.mxu0 0
    %2623 = vmatpush1.bf16.msra.mxu0 0
    %2624 = vmatprep.subr.bf16.mxu0 0
    %2625 = vmatpush1.bf16.msra.mxu0 0
    %2626 = vmatprep.subr.bf16.mxu0 0
    %2627 = vmatpush1.bf16.msra.mxu0 0
    %2628 = vmatprep.subr.bf16.mxu0 0
    %2629 = vmatpush1.bf16.msra.mxu0 0
    %2630 = vmatprep.subr.bf16.mxu0 0
    %2631 = vmatpush1.bf16.msra.mxu0 0
    %2632 = vmatprep.subr.bf16.mxu0 0
    %2633 = vmatpush1.bf16.msra.mxu0 0
    %2634 = vmatprep.mubr.bf16.mxu0 0
    %2635 = vmatmul.mubr.bf16.gmra.mrb[0].mxu0 %v659
    %v2636 = vpop.f32.mrb[0].mxu0
    %v2637 = vadd.f32 %v2596, %v2636
    %v2638 = vpop.f32.mrb[0].mxu0
    %v2639 = vadd.f32 %v2598, %v2638
    %v2640 = vpop.f32.mrb[0].mxu0
    %v2641 = vpop.f32.mrb[0].mxu0
    %2642 = vdwg.mxu0
    %2643 = vmatprep.subr.bf16.mxu0 %v1922
    %2644 = vmatpush1.bf16.msra.mxu0 %v1921
    %2645 = vmatprep.subr.bf16.mxu0 %v1927
    %2646 = vmatpush1.bf16.msra.mxu0 %v1926
    %2647 = vmatprep.subr.bf16.mxu0 %v1932
    %2648 = vmatpush1.bf16.msra.mxu0 %v1931
    %2649 = vmatprep.subr.bf16.mxu0 %v1937
    %2650 = vmatpush1.bf16.msra.mxu0 %v1936
    %2651 = vmatprep.subr.bf16.mxu0 %v1942
    %2652 = vmatpush1.bf16.msra.mxu0 %v1941
    %2653 = vmatprep.subr.bf16.mxu0 %v1947
    %2654 = vmatpush1.bf16.msra.mxu0 %v1946
    %2655 = vmatprep.subr.bf16.mxu0 %v1952
    %2656 = vmatpush1.bf16.msra.mxu0 %v1951
    %2657 = vmatprep.subr.bf16.mxu0 %v1957
    %2658 = vmatpush1.bf16.msra.mxu0 %v1956
    %2659 = vmatprep.subr.bf16.mxu0 %v1962
    %2660 = vmatpush1.bf16.msra.mxu0 %v1961
    %2661 = vmatprep.subr.bf16.mxu0 %v1967
    %2662 = vmatpush1.bf16.msra.mxu0 %v1966
    %2663 = vmatprep.subr.bf16.mxu0 %v1972
    %2664 = vmatpush1.bf16.msra.mxu0 %v1971
    %2665 = vmatprep.subr.bf16.mxu0 %v1977
    %2666 = vmatpush1.bf16.msra.mxu0 %v1976
    %2667 = vmatprep.subr.bf16.mxu0 %v1982
    %2668 = vmatpush1.bf16.msra.mxu0 %v1981
    %2669 = vmatprep.subr.bf16.mxu0 %v1987
    %2670 = vmatpush1.bf16.msra.mxu0 %v1986
    %2671 = vmatprep.subr.bf16.mxu0 %v1992
    %2672 = vmatpush1.bf16.msra.mxu0 %v1991
    %2673 = vmatprep.subr.bf16.mxu0 %v1997
    %2674 = vmatpush1.bf16.msra.mxu0 %v1996
    %2675 = vmatprep.mubr.bf16.mxu0 %v654
    %2676 = vmatmul.mubr.bf16.gmra.mrb[0].mxu0 %v653
    %v2677 = vpop.f32.mrb[0].mxu0
    %v2678 = vadd.f32 %v1009, %v2677
    %v2679 = vpop.f32.mrb[0].mxu0
    %v2680 = vadd.f32 %v1013, %v2679
    %v2681 = vpop.f32.mrb[0].mxu0
    %v2682 = vpop.f32.mrb[0].mxu0
    %2683 = vdwg.mxu0
    %2684 = vmatprep.subr.bf16.mxu0 %v2002
    %2685 = vmatpush1.bf16.msra.mxu0 %v2001
    %2686 = vmatprep.subr.bf16.mxu0 %v2007
    %2687 = vmatpush1.bf16.msra.mxu0 %v2006
    %2688 = vmatprep.subr.bf16.mxu0 %v2012
    %2689 = vmatpush1.bf16.msra.mxu0 %v2011
    %2690 = vmatprep.subr.bf16.mxu0 %v2017
    %2691 = vmatpush1.bf16.msra.mxu0 %v2016
    %2692 = vmatprep.subr.bf16.mxu0 %v2022
    %2693 = vmatpush1.bf16.msra.mxu0 %v2021
    %2694 = vmatprep.subr.bf16.mxu0 %v2027
    %2695 = vmatpush1.bf16.msra.mxu0 %v2026
    %2696 = vmatprep.subr.bf16.mxu0 %v2032
    %2697 = vmatpush1.bf16.msra.mxu0 %v2031
    %2698 = vmatprep.subr.bf16.mxu0 %v2037
    %2699 = vmatpush1.bf16.msra.mxu0 %v2036
    %2700 = vmatprep.subr.bf16.mxu0 %v2042
    %2701 = vmatpush1.bf16.msra.mxu0 %v2041
    %2702 = vmatprep.subr.bf16.mxu0 %v2047
    %2703 = vmatpush1.bf16.msra.mxu0 %v2046
    %2704 = vmatprep.subr.bf16.mxu0 %v2052
    %2705 = vmatpush1.bf16.msra.mxu0 %v2051
    %2706 = vmatprep.subr.bf16.mxu0 %v2057
    %2707 = vmatpush1.bf16.msra.mxu0 %v2056
    %2708 = vmatprep.subr.bf16.mxu0 %v2062
    %2709 = vmatpush1.bf16.msra.mxu0 %v2061
    %2710 = vmatprep.subr.bf16.mxu0 %v2067
    %2711 = vmatpush1.bf16.msra.mxu0 %v2066
    %2712 = vmatprep.subr.bf16.mxu0 %v2072
    %2713 = vmatpush1.bf16.msra.mxu0 %v2071
    %2714 = vmatprep.subr.bf16.mxu0 %v2077
    %2715 = vmatpush1.bf16.msra.mxu0 %v2076
    %2716 = vmatprep.mubr.bf16.mxu0 %v656
    %2717 = vmatmul.mubr.bf16.gmra.mrb[0].mxu0 %v655
    %v2718 = vpop.f32.mrb[0].mxu0
    %v2719 = vadd.f32 %v2678, %v2718
    %v2720 = vpop.f32.mrb[0].mxu0
    %v2721 = vadd.f32 %v2680, %v2720
    %v2722 = vpop.f32.mrb[0].mxu0
    %v2723 = vpop.f32.mrb[0].mxu0
    %2724 = vdwg.mxu0
    %2725 = vmatprep.subr.bf16.mxu0 %v2082
    %2726 = vmatpush1.bf16.msra.mxu0 %v2081
    %2727 = vmatprep.subr.bf16.mxu0 %v2087
    %2728 = vmatpush1.bf16.msra.mxu0 %v2086
    %2729 = vmatprep.subr.bf16.mxu0 %v2092
    %2730 = vmatpush1.bf16.msra.mxu0 %v2091
    %2731 = vmatprep.subr.bf16.mxu0 %v2097
    %2732 = vmatpush1.bf16.msra.mxu0 %v2096
    %2733 = vmatprep.subr.bf16.mxu0 %v2102
    %2734 = vmatpush1.bf16.msra.mxu0 %v2101
    %2735 = vmatprep.subr.bf16.mxu0 %v2107
    %2736 = vmatpush1.bf16.msra.mxu0 %v2106
    %2737 = vmatprep.subr.bf16.mxu0 %v2112
    %2738 = vmatpush1.bf16.msra.mxu0 %v2111
    %2739 = vmatprep.subr.bf16.mxu0 %v2117
    %2740 = vmatpush1.bf16.msra.mxu0 %v2116
    %2741 = vmatprep.subr.bf16.mxu0 %v2122
    %2742 = vmatpush1.bf16.msra.mxu0 %v2121
    %2743 = vmatprep.subr.bf16.mxu0 %v2127
    %2744 = vmatpush1.bf16.msra.mxu0 %v2126
    %2745 = vmatprep.subr.bf16.mxu0 %v2132
    %2746 = vmatpush1.bf16.msra.mxu0 %v2131
    %2747 = vmatprep.subr.bf16.mxu0 %v2137
    %2748 = vmatpush1.bf16.msra.mxu0 %v2136
    %2749 = vmatprep.subr.bf16.mxu0 %v2142
    %2750 = vmatpush1.bf16.msra.mxu0 %v2141
    %2751 = vmatprep.subr.bf16.mxu0 %v2147
    %2752 = vmatpush1.bf16.msra.mxu0 %v2146
    %2753 = vmatprep.subr.bf16.mxu0 %v2152
    %2754 = vmatpush1.bf16.msra.mxu0 %v2151
    %2755 = vmatprep.subr.bf16.mxu0 %v2157
    %2756 = vmatpush1.bf16.msra.mxu0 %v2156
    %2757 = vmatprep.mubr.bf16.mxu0 %v658
    %2758 = vmatmul.mubr.bf16.gmra.mrb[0].mxu0 %v657
    %v2759 = vpop.f32.mrb[0].mxu0
    %v2760 = vadd.f32 %v2719, %v2759
    %v2761 = vpop.f32.mrb[0].mxu0
    %v2762 = vadd.f32 %v2721, %v2761
    %v2763 = vpop.f32.mrb[0].mxu0
    %v2764 = vpop.f32.mrb[0].mxu0
    %2765 = vdwg.mxu0
    %2766 = vmatprep.subr.bf16.mxu0 %v2162
    %2767 = vmatpush1.bf16.msra.mxu0 %v2161
    %2768 = vmatprep.subr.bf16.mxu0 %v2167
    %2769 = vmatpush1.bf16.msra.mxu0 %v2166
    %2770 = vmatprep.subr.bf16.mxu0 %v2172
    %2771 = vmatpush1.bf16.msra.mxu0 %v2171
    %2772 = vmatprep.subr.bf16.mxu0 %v2177
    %2773 = vmatpush1.bf16.msra.mxu0 %v2176
    %2774 = vmatprep.subr.bf16.mxu0 %v2182
    %2775 = vmatpush1.bf16.msra.mxu0 %v2181
    %2776 = vmatprep.subr.bf16.mxu0 %v2187
    %2777 = vmatpush1.bf16.msra.mxu0 %v2186
    %2778 = vmatprep.subr.bf16.mxu0 %v2192
    %2779 = vmatpush1.bf16.msra.mxu0 %v2191
    %2780 = vmatprep.subr.bf16.mxu0 %v2197
    %2781 = vmatpush1.bf16.msra.mxu0 %v2196
    %2782 = vmatprep.subr.bf16.mxu0 0
    %2783 = vmatpush1.bf16.msra.mxu0 0
    %2784 = vmatprep.subr.bf16.mxu0 0
    %2785 = vmatpush1.bf16.msra.mxu0 0
    %2786 = vmatprep.subr.bf16.mxu0 0
    %2787 = vmatpush1.bf16.msra.mxu0 0
    %2788 = vmatprep.subr.bf16.mxu0 0
    %2789 = vmatpush1.bf16.msra.mxu0 0
    %2790 = vmatprep.subr.bf16.mxu0 0
    %2791 = vmatpush1.bf16.msra.mxu0 0
    %2792 = vmatprep.subr.bf16.mxu0 0
    %2793 = vmatpush1.bf16.msra.mxu0 0
    %2794 = vmatprep.subr.bf16.mxu0 0
    %2795 = vmatpush1.bf16.msra.mxu0 0
    %2796 = vmatprep.subr.bf16.mxu0 0
    %2797 = vmatpush1.bf16.msra.mxu0 0
    %2798 = vmatprep.mubr.bf16.mxu0 0
    %2799 = vmatmul.mubr.bf16.gmra.mrb[0].mxu0 %v659
    %v2800 = vpop.f32.mrb[0].mxu0
    %v2801 = vadd.f32 %v2760, %v2800
    %v2802 = vpop.f32.mrb[0].mxu0
    %v2803 = vadd.f32 %v2762, %v2802
    %v2804 = vpop.f32.mrb[0].mxu0
    %v2805 = vpop.f32.mrb[0].mxu0
    %2806 = vdwg.mxu0
    %2807 = vmatprep.subr.bf16.mxu0 0
    %2808 = vmatpush1.bf16.msra.mxu0 %v1923
    %2809 = vmatprep.subr.bf16.mxu0 0
    %2810 = vmatpush1.bf16.msra.mxu0 %v1928
    %2811 = vmatprep.subr.bf16.mxu0 0
    %2812 = vmatpush1.bf16.msra.mxu0 %v1933
    %2813 = vmatprep.subr.bf16.mxu0 0
    %2814 = vmatpush1.bf16.msra.mxu0 %v1938
    %2815 = vmatprep.subr.bf16.mxu0 0
    %2816 = vmatpush1.bf16.msra.mxu0 %v1943
    %2817 = vmatprep.subr.bf16.mxu0 0
    %2818 = vmatpush1.bf16.msra.mxu0 %v1948
    %2819 = vmatprep.subr.bf16.mxu0 0
    %2820 = vmatpush1.bf16.msra.mxu0 %v1953
    %2821 = vmatprep.subr.bf16.mxu0 0
    %2822 = vmatpush1.bf16.msra.mxu0 %v1958
    %2823 = vmatprep.subr.bf16.mxu0 0
    %2824 = vmatpush1.bf16.msra.mxu0 %v1963
    %2825 = vmatprep.subr.bf16.mxu0 0
    %2826 = vmatpush1.bf16.msra.mxu0 %v1968
    %2827 = vmatprep.subr.bf16.mxu0 0
    %2828 = vmatpush1.bf16.msra.mxu0 %v1973
    %2829 = vmatprep.subr.bf16.mxu0 0
    %2830 = vmatpush1.bf16.msra.mxu0 %v1978
    %2831 = vmatprep.subr.bf16.mxu0 0
    %2832 = vmatpush1.bf16.msra.mxu0 %v1983
    %2833 = vmatprep.subr.bf16.mxu0 0
    %2834 = vmatpush1.bf16.msra.mxu0 %v1988
    %2835 = vmatprep.subr.bf16.mxu0 0
    %2836 = vmatpush1.bf16.msra.mxu0 %v1993
    %2837 = vmatprep.subr.bf16.mxu0 0
    %2838 = vmatpush1.bf16.msra.mxu0 %v1998
    %2839 = vmatprep.mubr.bf16.mxu0 %v654
    %2840 = vmatmul.mubr.bf16.gmra.mrb[0].mxu0 %v653
    %v2841 = vpop.f32.mrb[0].mxu0
    %v2842 = vadd.f32 %v1017, %v2841
    %v2843 = vpop.f32.mrb[0].mxu0
    %v2844 = vpop.f32.mrb[0].mxu0
    %v2845 = vpop.f32.mrb[0].mxu0
    %2846 = vdwg.mxu0
    %2847 = vmatprep.subr.bf16.mxu0 0
    %2848 = vmatpush1.bf16.msra.mxu0 %v2003
    %2849 = vmatprep.subr.bf16.mxu0 0
    %2850 = vmatpush1.bf16.msra.mxu0 %v2008
    %2851 = vmatprep.subr.bf16.mxu0 0
    %2852 = vmatpush1.bf16.msra.mxu0 %v2013
    %2853 = vmatprep.subr.bf16.mxu0 0
    %2854 = vmatpush1.bf16.msra.mxu0 %v2018
    %2855 = vmatprep.subr.bf16.mxu0 0
    %2856 = vmatpush1.bf16.msra.mxu0 %v2023
    %2857 = vmatprep.subr.bf16.mxu0 0
    %2858 = vmatpush1.bf16.msra.mxu0 %v2028
    %2859 = vmatprep.subr.bf16.mxu0 0
    %2860 = vmatpush1.bf16.msra.mxu0 %v2033
    %2861 = vmatprep.subr.bf16.mxu0 0
    %2862 = vmatpush1.bf16.msra.mxu0 %v2038
    %2863 = vmatprep.subr.bf16.mxu0 0
    %2864 = vmatpush1.bf16.msra.mxu0 %v2043
    %2865 = vmatprep.subr.bf16.mxu0 0
    %2866 = vmatpush1.bf16.msra.mxu0 %v2048
    %2867 = vmatprep.subr.bf16.mxu0 0
    %2868 = vmatpush1.bf16.msra.mxu0 %v2053
    %2869 = vmatprep.subr.bf16.mxu0 0
    %2870 = vmatpush1.bf16.msra.mxu0 %v2058
    %2871 = vmatprep.subr.bf16.mxu0 0
    %2872 = vmatpush1.bf16.msra.mxu0 %v2063
    %2873 = vmatprep.subr.bf16.mxu0 0
    %2874 = vmatpush1.bf16.msra.mxu0 %v2068
    %2875 = vmatprep.subr.bf16.mxu0 0
    %2876 = vmatpush1.bf16.msra.mxu0 %v2073
    %2877 = vmatprep.subr.bf16.mxu0 0
    %2878 = vmatpush1.bf16.msra.mxu0 %v2078
    %2879 = vmatprep.mubr.bf16.mxu0 %v656
    %2880 = vmatmul.mubr.bf16.gmra.mrb[0].mxu0 %v655
    %v2881 = vpop.f32.mrb[0].mxu0
    %v2882 = vadd.f32 %v2842, %v2881
    %v2883 = vpop.f32.mrb[0].mxu0
    %v2884 = vpop.f32.mrb[0].mxu0
    %v2885 = vpop.f32.mrb[0].mxu0
    %2886 = vdwg.mxu0
    %2887 = vmatprep.subr.bf16.mxu0 0
    %2888 = vmatpush1.bf16.msra.mxu0 %v2083
    %2889 = vmatprep.subr.bf16.mxu0 0
    %2890 = vmatpush1.bf16.msra.mxu0 %v2088
    %2891 = vmatprep.subr.bf16.mxu0 0
    %2892 = vmatpush1.bf16.msra.mxu0 %v2093
    %2893 = vmatprep.subr.bf16.mxu0 0
    %2894 = vmatpush1.bf16.msra.mxu0 %v2098
    %2895 = vmatprep.subr.bf16.mxu0 0
    %2896 = vmatpush1.bf16.msra.mxu0 %v2103
    %2897 = vmatprep.subr.bf16.mxu0 0
    %2898 = vmatpush1.bf16.msra.mxu0 %v2108
    %2899 = vmatprep.subr.bf16.mxu0 0
    %2900 = vmatpush1.bf16.msra.mxu0 %v2113
    %2901 = vmatprep.subr.bf16.mxu0 0
    %2902 = vmatpush1.bf16.msra.mxu0 %v2118
    %2903 = vmatprep.subr.bf16.mxu0 0
    %2904 = vmatpush1.bf16.msra.mxu0 %v2123
    %2905 = vmatprep.subr.bf16.mxu0 0
    %2906 = vmatpush1.bf16.msra.mxu0 %v2128
    %2907 = vmatprep.subr.bf16.mxu0 0
    %2908 = vmatpush1.bf16.msra.mxu0 %v2133
    %2909 = vmatprep.subr.bf16.mxu0 0
    %2910 = vmatpush1.bf16.msra.mxu0 %v2138
    %2911 = vmatprep.subr.bf16.mxu0 0
    %2912 = vmatpush1.bf16.msra.mxu0 %v2143
    %2913 = vmatprep.subr.bf16.mxu0 0
    %2914 = vmatpush1.bf16.msra.mxu0 %v2148
    %2915 = vmatprep.subr.bf16.mxu0 0
    %2916 = vmatpush1.bf16.msra.mxu0 %v2153
    %2917 = vmatprep.subr.bf16.mxu0 0
    %2918 = vmatpush1.bf16.msra.mxu0 %v2158
    %2919 = vmatprep.mubr.bf16.mxu0 %v658
    %2920 = vmatmul.mubr.bf16.gmra.mrb[0].mxu0 %v657
    %v2921 = vpop.f32.mrb[0].mxu0
    %v2922 = vadd.f32 %v2882, %v2921
    %v2923 = vpop.f32.mrb[0].mxu0
    %v2924 = vpop.f32.mrb[0].mxu0
    %v2925 = vpop.f32.mrb[0].mxu0
    %2926 = vdwg.mxu0
    %2927 = vmatprep.subr.bf16.mxu0 0
    %2928 = vmatpush1.bf16.msra.mxu0 %v2163
    %2929 = vmatprep.subr.bf16.mxu0 0
    %2930 = vmatpush1.bf16.msra.mxu0 %v2168
    %2931 = vmatprep.subr.bf16.mxu0 0
    %2932 = vmatpush1.bf16.msra.mxu0 %v2173
    %2933 = vmatprep.subr.bf16.mxu0 0
    %2934 = vmatpush1.bf16.msra.mxu0 %v2178
    %2935 = vmatprep.subr.bf16.mxu0 0
    %2936 = vmatpush1.bf16.msra.mxu0 %v2183
    %2937 = vmatprep.subr.bf16.mxu0 0
    %2938 = vmatpush1.bf16.msra.mxu0 %v2188
    %2939 = vmatprep.subr.bf16.mxu0 0
    %2940 = vmatpush1.bf16.msra.mxu0 %v2193
    %2941 = vmatprep.subr.bf16.mxu0 0
    %2942 = vmatpush1.bf16.msra.mxu0 %v2198
    %2943 = vmatprep.subr.bf16.mxu0 0
    %2944 = vmatpush1.bf16.msra.mxu0 0
    %2945 = vmatprep.subr.bf16.mxu0 0
    %2946 = vmatpush1.bf16.msra.mxu0 0
    %2947 = vmatprep.subr.bf16.mxu0 0
    %2948 = vmatpush1.bf16.msra.mxu0 0
    %2949 = vmatprep.subr.bf16.mxu0 0
    %2950 = vmatpush1.bf16.msra.mxu0 0
    %2951 = vmatprep.subr.bf16.mxu0 0
    %2952 = vmatpush1.bf16.msra.mxu0 0
    %2953 = vmatprep.subr.bf16.mxu0 0
    %2954 = vmatpush1.bf16.msra.mxu0 0
    %2955 = vmatprep.subr.bf16.mxu0 0
    %2956 = vmatpush1.bf16.msra.mxu0 0
    %2957 = vmatprep.subr.bf16.mxu0 0
    %2958 = vmatpush1.bf16.msra.mxu0 0
    %2959 = vmatprep.mubr.bf16.mxu0 0
    %2960 = vmatmul.mubr.bf16.gmra.mrb[0].mxu0 %v659
    %v2961 = vpop.f32.mrb[0].mxu0
    %v2962 = vadd.f32 %v2922, %v2961
    %v2963 = vpop.f32.mrb[0].mxu0
    %v2964 = vpop.f32.mrb[0].mxu0
    %v2965 = vpop.f32.mrb[0].mxu0
    %2966 = vdwg.mxu0
    %v2967 = vmax.f32 %v2637, 0.0
    %v2968 = vmax.f32 %v2639, 0.0
    %v2969 = vmax.f32 %v2801, 0.0
    %v2970 = vmax.f32 %v2803, 0.0
    %v2971 = vmax.f32 %v2962, 0.0
    %v2972 = vpack.c.bf16 %v2967, %v2967
    %v2973 = vpack.c.bf16 %v2968, %v2968
    %v2974 = vpack.c.bf16 %v2969, %v2969
    %v2975 = vpack.c.bf16 %v2970, %v2970
    %v2976 = vpack.c.bf16 %v2971, %v2971
    %v2977 = vld [vmem:[%s7] sm:$0xf]
    %v2978 = vld [vmem:[%s7 + $0x4] sm:$0xf]
    %v2979 = vld [vmem:[%s7 + $0x8] sm:$0xf]
    %v2980 = vld [vmem:[%s7 + $0xc] sm:$0xf]
    %v2981 = vld [vmem:[%s7 + $0x10] sm:$0xf]
    %v2982 = vld [vmem:[%s7 + $0x14] sm:$0xf]
    %v2983 = vld [vmem:[%s7 + $0x18] sm:$0xf]
    %v2984 = vld [vmem:[%s7 + $0x1c] sm:$0xf]
    %v2985 = vld [vmem:[%s7 + $0x20] sm:$0xf]
    %v2986 = vld [vmem:[%s7 + $0x24] sm:$0xf]
    %v2987 = vld [vmem:[%s7 + $0x28] sm:$0xf]
    %v2988 = vld [vmem:[%s7 + $0x2c] sm:$0xf]
    %v2989 = vld [vmem:[%s7 + $0x30] sm:$0xf]
    %v2990 = vld [vmem:[%s7 + $0x34] sm:$0xf]
    %v2991 = vld [vmem:[%s7 + $0x38] sm:$0xf]
    %v2992 = vld [vmem:[%s7 + $0x3c] sm:$0xf]
    %v2993 = vld [vmem:[%s7 + $0x40] sm:$0xf]
    %v2994 = vld [vmem:[%s7 + $0x44] sm:$0xf]
    %v2995 = vld [vmem:[%s7 + $0x48] sm:$0xf]
    %v2996 = vld [vmem:[%s7 + $0x4c] sm:$0xf]
    %v2997 = vld [vmem:[%s7 + $0x50] sm:$0xf]
    %v2998 = vld [vmem:[%s7 + $0x54] sm:$0xf]
    %v2999 = vld [vmem:[%s7 + $0x58] sm:$0xf]
    %v3000 = vld [vmem:[%s7 + $0x5c] sm:$0xf]
    %v3001 = vld [vmem:[%s7 + $0x60] sm:$0xf]
    %v3002 = vld [vmem:[%s7 + $0x64] sm:$0xf]
    %v3003 = vld [vmem:[%s7 + $0x68] sm:$0xf]
    %v3004 = vld [vmem:[%s7 + $0x6c] sm:$0xf]
    %v3005 = vld [vmem:[%s7 + $0x70] sm:$0xf]
    %v3006 = vld [vmem:[%s7 + $0x74] sm:$0xf]
    %v3007 = vld [vmem:[%s7 + $0x78] sm:$0xf]
    %v3008 = vld [vmem:[%s7 + $0x7c] sm:$0xf]
    %v3009 = vld [vmem:[%s7 + $0x80] sm:$0xf]
    %v3010 = vld [vmem:[%s7 + $0x84] sm:$0xf]
    %v3011 = vld [vmem:[%s7 + $0x88] sm:$0xf]
    %v3012 = vld [vmem:[%s7 + $0x8c] sm:$0xf]
    %v3013 = vld [vmem:[%s7 + $0x90] sm:$0xf]
    %v3014 = vld [vmem:[%s7 + $0x94] sm:$0xf]
    %v3015 = vld [vmem:[%s7 + $0x98] sm:$0xf]
    %v3016 = vld [vmem:[%s7 + $0x9c] sm:$0xf]
    %v3017 = vld [vmem:[%s7 + $0xa0] sm:$0xf]
    %v3018 = vld [vmem:[%s7 + $0xa4] sm:$0xf]
    %v3019 = vld [vmem:[%s7 + $0xa8] sm:$0xf]
    %v3020 = vld [vmem:[%s7 + $0xac] sm:$0xf]
    %v3021 = vld [vmem:[%s7 + $0xb0] sm:$0xf]
    %v3022 = vld [vmem:[%s7 + $0xb4] sm:$0xf]
    %v3023 = vld [vmem:[%s7 + $0xb8] sm:$0xf]
    %v3024 = vld [vmem:[%s7 + $0xbc] sm:$0xf]
    %v3025 = vld [vmem:[%s7 + $0xc0] sm:$0xf]
    %v3026 = vld [vmem:[%s7 + $0xc4] sm:$0xf]
    %v3027 = vld [vmem:[%s7 + $0xc8] sm:$0xf]
    %v3028 = vld [vmem:[%s7 + $0xcc] sm:$0xf]
    %v3029 = vld [vmem:[%s7 + $0xd0] sm:$0xf]
    %v3030 = vld [vmem:[%s7 + $0xd4] sm:$0xf]
    %v3031 = vld [vmem:[%s7 + $0xd8] sm:$0xf]
    %v3032 = vld [vmem:[%s7 + $0xdc] sm:$0xf]
    %v3033 = vld [vmem:[%s7 + $0xe0] sm:$0xf]
    %v3034 = vld [vmem:[%s7 + $0xe4] sm:$0xf]
    %v3035 = vld [vmem:[%s7 + $0xe8] sm:$0xf]
    %v3036 = vld [vmem:[%s7 + $0xec] sm:$0xf]
    %v3037 = vld [vmem:[%s7 + $0xf0] sm:$0xf]
    %v3038 = vld [vmem:[%s7 + $0xf4] sm:$0xf]
    %v3039 = vld [vmem:[%s7 + $0xf8] sm:$0xf]
    %v3040 = vld [vmem:[%s7 + $0xfc] sm:$0xf]
    %v3041 = vld [vmem:[%s7 + $0x100] sm:$0xf]
    %v3042 = vld [vmem:[%s7 + $0x104] sm:$0xf]
    %v3043 = vld [vmem:[%s7 + $0x108] sm:$0xf]
    %v3044 = vld [vmem:[%s7 + $0x10c] sm:$0xf]
    %v3045 = vld [vmem:[%s7 + $0x110] sm:$0xf]
    %v3046 = vld [vmem:[%s7 + $0x114] sm:$0xf]
    %v3047 = vld [vmem:[%s7 + $0x118] sm:$0xf]
    %v3048 = vld [vmem:[%s7 + $0x11c] sm:$0xf]
    %v3049 = vld [vmem:[%s7 + $0x120] sm:$0xf]
    %v3050 = vld [vmem:[%s7 + $0x124] sm:$0xf]
    %v3051 = vld [vmem:[%s7 + $0x128] sm:$0xf]
    %v3052 = vld [vmem:[%s7 + $0x12c] sm:$0xf]
    %v3053 = vld [vmem:[%s7 + $0x130] sm:$0xf]
    %v3054 = vld [vmem:[%s7 + $0x134] sm:$0xf]
    %v3055 = vld [vmem:[%s7 + $0x138] sm:$0xf]
    %v3056 = vld [vmem:[%s7 + $0x13c] sm:$0xf]
    %v3057 = vld [vmem:[#allocation13] sm:$0x1]
    %v3059 = vlaneseq
    %v3060 = vshrl.u32 %v3059, 7
    %v3061 = vsub.s32 0, %v3060
    %v3062 = vrot.slane %v3057, %v3061
    %v3144 = vunpack.c.l.b16 %v2977
    %v3145 = vunpack.c.l.b16 %v2978
    %v3146 = vunpack.c.l.b16 %v2979
    %v3147 = vunpack.c.l.b16 %v2980
    %v3148 = vunpack.c.l.b16 %v2981
    %v3149 = vunpack.c.l.b16 %v2982
    %v3150 = vunpack.c.l.b16 %v2983
    %v3151 = vunpack.c.l.b16 %v2984
    %v3152 = vunpack.c.l.b16 %v2985
    %v3153 = vunpack.c.l.b16 %v2986
    %v3154 = vunpack.c.l.b16 %v2987
    %v3155 = vunpack.c.l.b16 %v2988
    %v3156 = vunpack.c.l.b16 %v2989
    %v3157 = vunpack.c.l.b16 %v2990
    %v3158 = vunpack.c.l.b16 %v2991
    %v3159 = vunpack.c.l.b16 %v2992
    %v3160 = vunpack.c.l.b16 %v2993
    %v3161 = vunpack.c.l.b16 %v2994
    %v3162 = vunpack.c.l.b16 %v2995
    %v3163 = vunpack.c.l.b16 %v2996
    %v3164 = vunpack.c.l.b16 %v2997
    %v3165 = vunpack.c.l.b16 %v2998
    %v3166 = vunpack.c.l.b16 %v2999
    %v3167 = vunpack.c.l.b16 %v3000
    %v3168 = vunpack.c.l.b16 %v3001
    %v3169 = vunpack.c.l.b16 %v3002
    %v3170 = vunpack.c.l.b16 %v3003
    %v3171 = vunpack.c.l.b16 %v3004
    %v3172 = vunpack.c.l.b16 %v3005
    %v3173 = vunpack.c.l.b16 %v3006
    %v3174 = vunpack.c.l.b16 %v3007
    %v3175 = vunpack.c.l.b16 %v3008
    %v3176 = vunpack.c.l.b16 %v3009
    %v3177 = vunpack.c.l.b16 %v3010
    %v3178 = vunpack.c.l.b16 %v3011
    %v3179 = vunpack.c.l.b16 %v3012
    %v3180 = vunpack.c.l.b16 %v3013
    %v3181 = vunpack.c.l.b16 %v3014
    %v3182 = vunpack.c.l.b16 %v3015
    %v3183 = vunpack.c.l.b16 %v3016
    %v3184 = vunpack.c.l.b16 %v3017
    %v3185 = vunpack.c.l.b16 %v3018
    %v3186 = vunpack.c.l.b16 %v3019
    %v3187 = vunpack.c.l.b16 %v3020
    %v3188 = vunpack.c.l.b16 %v3021
    %v3189 = vunpack.c.l.b16 %v3022
    %v3190 = vunpack.c.l.b16 %v3023
    %v3191 = vunpack.c.l.b16 %v3024
    %v3192 = vunpack.c.l.b16 %v3025
    %v3193 = vunpack.c.l.b16 %v3026
    %v3194 = vunpack.c.l.b16 %v3027
    %v3195 = vunpack.c.l.b16 %v3028
    %v3196 = vunpack.c.l.b16 %v3029
    %v3197 = vunpack.c.l.b16 %v3030
    %v3198 = vunpack.c.l.b16 %v3031
    %v3199 = vunpack.c.l.b16 %v3032
    %v3200 = vunpack.c.l.b16 %v3033
    %v3201 = vunpack.c.l.b16 %v3034
    %v3202 = vunpack.c.l.b16 %v3035
    %v3203 = vunpack.c.l.b16 %v3036
    %v3204 = vunpack.c.l.b16 %v3037
    %v3205 = vunpack.c.l.b16 %v3038
    %v3206 = vunpack.c.l.b16 %v3039
    %v3207 = vunpack.c.l.b16 %v3040
    %v3208 = vunpack.c.l.b16 %v3041
    %v3209 = vunpack.c.l.b16 %v3042
    %v3210 = vunpack.c.l.b16 %v3043
    %v3211 = vunpack.c.l.b16 %v3044
    %v3212 = vunpack.c.l.b16 %v3045
    %v3213 = vunpack.c.l.b16 %v3046
    %v3214 = vunpack.c.l.b16 %v3047
    %v3215 = vunpack.c.l.b16 %v3048
    %v3216 = vunpack.c.l.b16 %v3049
    %v3217 = vunpack.c.l.b16 %v3050
    %v3218 = vunpack.c.l.b16 %v3051
    %v3219 = vunpack.c.l.b16 %v3052
    %v3220 = vunpack.c.l.b16 %v3053
    %v3221 = vunpack.c.l.b16 %v3054
    %v3222 = vunpack.c.l.b16 %v3055
    %v3223 = vunpack.c.l.b16 %v3056
    %v3224 = vpack.c.b16 %v3145, %v3144
    %v3225 = vpack.c.b16 %v3147, %v3146
    %v3226 = vpack.c.b16 %v3149, %v3148
    %v3227 = vpack.c.b16 %v3151, %v3150
    %v3228 = vpack.c.b16 %v3153, %v3152
    %v3229 = vpack.c.b16 %v3155, %v3154
    %v3230 = vpack.c.b16 %v3157, %v3156
    %v3231 = vpack.c.b16 %v3159, %v3158
    %v3232 = vpack.c.b16 %v3161, %v3160
    %v3233 = vpack.c.b16 %v3163, %v3162
    %v3234 = vpack.c.b16 %v3165, %v3164
    %v3235 = vpack.c.b16 %v3167, %v3166
    %v3236 = vpack.c.b16 %v3169, %v3168
    %v3237 = vpack.c.b16 %v3171, %v3170
    %v3238 = vpack.c.b16 %v3173, %v3172
    %v3239 = vpack.c.b16 %v3175, %v3174
    %v3240 = vpack.c.b16 %v3177, %v3176
    %v3241 = vpack.c.b16 %v3179, %v3178
    %v3242 = vpack.c.b16 %v3181, %v3180
    %v3243 = vpack.c.b16 %v3183, %v3182
    %v3244 = vpack.c.b16 %v3185, %v3184
    %v3245 = vpack.c.b16 %v3187, %v3186
    %v3246 = vpack.c.b16 %v3189, %v3188
    %v3247 = vpack.c.b16 %v3191, %v3190
    %v3248 = vpack.c.b16 %v3193, %v3192
    %v3249 = vpack.c.b16 %v3195, %v3194
    %v3250 = vpack.c.b16 %v3197, %v3196
    %v3251 = vpack.c.b16 %v3199, %v3198
    %v3252 = vpack.c.b16 %v3201, %v3200
    %v3253 = vpack.c.b16 %v3203, %v3202
    %v3254 = vpack.c.b16 %v3205, %v3204
    %v3255 = vpack.c.b16 %v3207, %v3206
    %v3256 = vpack.c.b16 %v3209, %v3208
    %v3257 = vpack.c.b16 %v3211, %v3210
    %v3258 = vpack.c.b16 %v3213, %v3212
    %v3259 = vpack.c.b16 %v3215, %v3214
    %v3260 = vpack.c.b16 %v3217, %v3216
    %v3261 = vpack.c.b16 %v3219, %v3218
    %v3262 = vpack.c.b16 %v3221, %v3220
    %v3263 = vpack.c.b16 %v3223, %v3222
    %3304 = vmatprep.subr.bf16.mxu0 0
    %3305 = vmatpush1.bf16.msra.mxu0 %v3224
    %3306 = vmatprep.subr.bf16.mxu0 0
    %3307 = vmatpush1.bf16.msra.mxu0 %v3225
    %3308 = vmatprep.subr.bf16.mxu0 0
    %3309 = vmatpush1.bf16.msra.mxu0 %v3226
    %3310 = vmatprep.subr.bf16.mxu0 0
    %3311 = vmatpush1.bf16.msra.mxu0 %v3227
    %3312 = vmatprep.subr.bf16.mxu0 0
    %3313 = vmatpush1.bf16.msra.mxu0 %v3228
    %3314 = vmatprep.subr.bf16.mxu0 0
    %3315 = vmatpush1.bf16.msra.mxu0 %v3229
    %3316 = vmatprep.subr.bf16.mxu0 0
    %3317 = vmatpush1.bf16.msra.mxu0 %v3230
    %3318 = vmatprep.subr.bf16.mxu0 0
    %3319 = vmatpush1.bf16.msra.mxu0 %v3231
    %3320 = vmatprep.subr.bf16.mxu0 0
    %3321 = vmatpush1.bf16.msra.mxu0 %v3232
    %3322 = vmatprep.subr.bf16.mxu0 0
    %3323 = vmatpush1.bf16.msra.mxu0 %v3233
    %3324 = vmatprep.subr.bf16.mxu0 0
    %3325 = vmatpush1.bf16.msra.mxu0 %v3234
    %3326 = vmatprep.subr.bf16.mxu0 0
    %3327 = vmatpush1.bf16.msra.mxu0 %v3235
    %3328 = vmatprep.subr.bf16.mxu0 0
    %3329 = vmatpush1.bf16.msra.mxu0 %v3236
    %3330 = vmatprep.subr.bf16.mxu0 0
    %3331 = vmatpush1.bf16.msra.mxu0 %v3237
    %3332 = vmatprep.subr.bf16.mxu0 0
    %3333 = vmatpush1.bf16.msra.mxu0 %v3238
    %3334 = vmatprep.subr.bf16.mxu0 0
    %3335 = vmatpush1.bf16.msra.mxu0 %v3239
    %3336 = vmatprep.mubr.bf16.mxu0 %v2973
    %3337 = vmatmul.mubr.bf16.gmra.mrb[0].mxu0 %v2972
    %v3338 = vpop.f32.mrb[0].mxu0
    %v3339 = vadd.f32 %v3062, %v3338
    %v3340 = vpop.f32.mrb[0].mxu0
    %v3341 = vpop.f32.mrb[0].mxu0
    %v3342 = vpop.f32.mrb[0].mxu0
    %3343 = vdwg.mxu0
    %3344 = vmatprep.subr.bf16.mxu0 0
    %3345 = vmatpush1.bf16.msra.mxu0 %v3240
    %3346 = vmatprep.subr.bf16.mxu0 0
    %3347 = vmatpush1.bf16.msra.mxu0 %v3241
    %3348 = vmatprep.subr.bf16.mxu0 0
    %3349 = vmatpush1.bf16.msra.mxu0 %v3242
    %3350 = vmatprep.subr.bf16.mxu0 0
    %3351 = vmatpush1.bf16.msra.mxu0 %v3243
    %3352 = vmatprep.subr.bf16.mxu0 0
    %3353 = vmatpush1.bf16.msra.mxu0 %v3244
    %3354 = vmatprep.subr.bf16.mxu0 0
    %3355 = vmatpush1.bf16.msra.mxu0 %v3245
    %3356 = vmatprep.subr.bf16.mxu0 0
    %3357 = vmatpush1.bf16.msra.mxu0 %v3246
    %3358 = vmatprep.subr.bf16.mxu0 0
    %3359 = vmatpush1.bf16.msra.mxu0 %v3247
    %3360 = vmatprep.subr.bf16.mxu0 0
    %3361 = vmatpush1.bf16.msra.mxu0 %v3248
    %3362 = vmatprep.subr.bf16.mxu0 0
    %3363 = vmatpush1.bf16.msra.mxu0 %v3249
    %3364 = vmatprep.subr.bf16.mxu0 0
    %3365 = vmatpush1.bf16.msra.mxu0 %v3250
    %3366 = vmatprep.subr.bf16.mxu0 0
    %3367 = vmatpush1.bf16.msra.mxu0 %v3251
    %3368 = vmatprep.subr.bf16.mxu0 0
    %3369 = vmatpush1.bf16.msra.mxu0 %v3252
    %3370 = vmatprep.subr.bf16.mxu0 0
    %3371 = vmatpush1.bf16.msra.mxu0 %v3253
    %3372 = vmatprep.subr.bf16.mxu0 0
    %3373 = vmatpush1.bf16.msra.mxu0 %v3254
    %3374 = vmatprep.subr.bf16.mxu0 0
    %3375 = vmatpush1.bf16.msra.mxu0 %v3255
    %3376 = vmatprep.mubr.bf16.mxu0 %v2975
    %3377 = vmatmul.mubr.bf16.gmra.mrb[0].mxu0 %v2974
    %v3378 = vpop.f32.mrb[0].mxu0
    %v3379 = vadd.f32 %v3339, %v3378
    %v3380 = vpop.f32.mrb[0].mxu0
    %v3381 = vpop.f32.mrb[0].mxu0
    %v3382 = vpop.f32.mrb[0].mxu0
    %3383 = vdwg.mxu0
    %3384 = vmatprep.subr.bf16.mxu0 0
    %3385 = vmatpush1.bf16.msra.mxu0 %v3256
    %3386 = vmatprep.subr.bf16.mxu0 0
    %3387 = vmatpush1.bf16.msra.mxu0 %v3257
    %3388 = vmatprep.subr.bf16.mxu0 0
    %3389 = vmatpush1.bf16.msra.mxu0 %v3258
    %3390 = vmatprep.subr.bf16.mxu0 0
    %3391 = vmatpush1.bf16.msra.mxu0 %v3259
    %3392 = vmatprep.subr.bf16.mxu0 0
    %3393 = vmatpush1.bf16.msra.mxu0 %v3260
    %3394 = vmatprep.subr.bf16.mxu0 0
    %3395 = vmatpush1.bf16.msra.mxu0 %v3261
    %3396 = vmatprep.subr.bf16.mxu0 0
    %3397 = vmatpush1.bf16.msra.mxu0 %v3262
    %3398 = vmatprep.subr.bf16.mxu0 0
    %3399 = vmatpush1.bf16.msra.mxu0 %v3263
    %3400 = vmatprep.subr.bf16.mxu0 0
    %3401 = vmatpush1.bf16.msra.mxu0 0
    %3402 = vmatprep.subr.bf16.mxu0 0
    %3403 = vmatpush1.bf16.msra.mxu0 0
    %3404 = vmatprep.subr.bf16.mxu0 0
    %3405 = vmatpush1.bf16.msra.mxu0 0
    %3406 = vmatprep.subr.bf16.mxu0 0
    %3407 = vmatpush1.bf16.msra.mxu0 0
    %3408 = vmatprep.subr.bf16.mxu0 0
    %3409 = vmatpush1.bf16.msra.mxu0 0
    %3410 = vmatprep.subr.bf16.mxu0 0
    %3411 = vmatpush1.bf16.msra.mxu0 0
    %3412 = vmatprep.subr.bf16.mxu0 0
    %3413 = vmatpush1.bf16.msra.mxu0 0
    %3414 = vmatprep.subr.bf16.mxu0 0
    %3415 = vmatpush1.bf16.msra.mxu0 0
    %3416 = vmatprep.mubr.bf16.mxu0 0
    %3417 = vmatmul.mubr.bf16.gmra.mrb[0].mxu0 %v2976
    %v3418 = vpop.f32.mrb[0].mxu0
    %v3419 = vadd.f32 %v3379, %v3418
    %v3420 = vpop.f32.mrb[0].mxu0
    %v3421 = vpop.f32.mrb[0].mxu0
    %v3422 = vpop.f32.mrb[0].mxu0
    %3423 = vdwg.mxu0
    %vm3424 = vcmask 9216
    %3425 = vst.msk [vmem:[%s9] sm:$0x3] %vm3424, %v3419
    // Predicated region
    $region70: #{critic_forward.1} parent=1 // pred_check
      _
    $region71: #{critic_forward.1} parent=1 // pred_check_branch
      %3427 = sbr.rel (0) target = $region73
    $region72: #{critic_forward.1} parent=1 // pred_region
      _
    $region73: #{critic_forward.1} parent=1 // pred_fallthru
      _
    // Predicated region
    $region74: #{critic_forward.1} parent=1 // pred_check
      _
    $region75: #{critic_forward.1} parent=1 // pred_check_branch
      %3429 = sbr.rel (0) target = $region77
    $region76: #{critic_forward.1} parent=1 // pred_region
      _
    $region77: #{critic_forward.1} parent=1 // pred_fallthru
      _
    %3430 = vsyncpa [#allocation3], 1
    %3431 = vsyncpa [#allocation5], 1
    %3432 = vsyncpa [#allocation8], 1
    %3433 = vsyncpa [#allocation11], 1
    %3434 = vsyncpa [#allocation14], 1

</llo_original>
